<compile_context>
chip_gen: v7x
topology: tpu7x:2x2x1
jax: 0.10.0
libtpu: 0.0.40
codegen_flags: <defaults>
</compile_context>

<pallas_src>
import functools

import jax
import jax.numpy as jnp
from jax.experimental import pallas as pl
from jax.experimental.pallas import tpu as pltpu

BN_EPS = 1e-3  # torchvision BasicConv2d uses BatchNorm2d(eps=0.001)


def _round_up(x, m):
    return ((x + m - 1) // m) * m


def _cdiv(a, b):
    return -(-a // b)


# ----------------------------------------------------------------------------
# Pallas kernel: out = relu(X @ W + bias), bf16 in, fp32 accumulate, bf16 out
# ----------------------------------------------------------------------------
def _matmul_bias_relu_kernel(x_ref, w_ref, b_ref, o_ref):
    y = jnp.dot(x_ref[...], w_ref[...], preferred_element_type=jnp.float32)
    y = y + b_ref[...]                       # fp32 epilogue (v5e-friendly)
    o_ref[...] = jnp.maximum(y, 0.0).astype(o_ref.dtype)


def _matmul_bias_relu(x, w, bias):
    """x: (M, K) bf16 patches, w: (K, N) bf16 (BN folded), bias: (N,) f32.

    Returns (M, N) bf16.  Single K tile (W resident across M), partial
    boundary blocks instead of pad/slice copies.
    """
    M, K = x.shape
    _, N = w.shape

    # K: one tile, padded only to a 16-row multiple (bf16 sublane packing).
    # Only Conv2d_1a (K=27 -> 32) actually pads; no more 768->1024 waste.
    k_pad = _round_up(K, 16)
    if k_pad != K:
        x = jnp.pad(x, ((0, 0), (0, k_pad - K)))
        w = jnp.pad(w, ((0, k_pad - K), (0, 0)))
    x = x.astype(jnp.bfloat16)
    w = w.astype(jnp.bfloat16)
    b2 = bias.reshape(1, N).astype(jnp.float32)

    # Tile selection.
    TM_CAP = 1024
    if M > TM_CAP:
        # Big-M (stem / 23x23) layers: balanced M tiles <= 1024, W resident.
        gm = _cdiv(M, TM_CAP)
        tm = _round_up(_cdiv(M, gm), 8)
        tn = N
    elif N > 256:
        # Deep layer, wide (fused) N: split N so both TCs get work (v7x).
        tm, tn = M, 256
    elif M >= 16:
        # Deep layer, narrow N: split the lone M tile in two instead.
        tm, tn = _round_up(_cdiv(M, 2), 8), N
    else:
        tm, tn = M, N
    grid = (_cdiv(M, tm), _cdiv(N, tn))

    return pl.pallas_call(
        _matmul_bias_relu_kernel,
        out_shape=jax.ShapeDtypeStruct((M, N), jnp.bfloat16),
        grid_spec=pltpu.PrefetchScalarGridSpec(
            num_scalar_prefetch=0,
            grid=grid,
            in_specs=[
                pl.BlockSpec((tm, k_pad), lambda i, j: (i, 0)),
                pl.BlockSpec((k_pad, tn), lambda i, j: (0, j)),
                pl.BlockSpec((1, tn), lambda i, j: (0, j)),
            ],
            out_specs=pl.BlockSpec((tm, tn), lambda i, j: (i, j)),
        ),
        compiler_params=pltpu.CompilerParams(
            dimension_semantics=("parallel", "parallel"),
            # Worst-case buffers here are < ~8 MiB; 48 MiB leaves headroom and
            # still fits v7x's 64 MiB physical VMEM (v5e/v6e have 128 MiB).
            vmem_limit_bytes=48 * 1024 * 1024,
        ),
    )(x, w, b2)


# ----------------------------------------------------------------------------
# conv + BN + ReLU (BasicConv2d), im2col formulation, jitted per shape
# ----------------------------------------------------------------------------
def _im2col(x, kh, kw, sh, sw, ph, pw):
    """x: NHWC -> patches (N*OH*OW, KH*KW*Cin), patch order (dy, dx, cin)."""
    n, h, w_, c = x.shape
    if (kh, kw) == (1, 1) and (sh, sw) == (1, 1) and (ph, pw) == (0, 0):
        return x.reshape(n * h * w_, c), h, w_
    xp = jnp.pad(x, ((0, 0), (ph, ph), (pw, pw), (0, 0)))
    oh = (h + 2 * ph - kh) // sh + 1
    ow = (w_ + 2 * pw - kw) // sw + 1
    taps = []
    for dy in range(kh):
        for dx in range(kw):
            taps.append(
                xp[:, dy:dy + (oh - 1) * sh + 1:sh,
                      dx:dx + (ow - 1) * sw + 1:sw, :]
            )
    patches = jnp.stack(taps, axis=3)          # (n, oh, ow, kh*kw, c)
    return patches.reshape(n * oh * ow, kh * kw * c), oh, ow


def _fold_bn(gamma, beta, mean, var):
    scale = gamma / jnp.sqrt(var + BN_EPS)
    bias = beta - mean * scale
    return scale, bias


@functools.partial(jax.jit, static_argnames=("stride", "padding"))
def _conv_bn_relu(x, w, gamma, beta, mean, var, *, stride, padding):
    """x: NHWC bf16; w: (Cout, Cin, KH, KW) f32; BN folded into weights/bias."""
    n = x.shape[0]
    cout, cin, kh, kw = w.shape
    sh, sw = stride
    ph, pw = padding
    scale, bias = _fold_bn(gamma, beta, mean, var)
    w2d = (jnp.transpose(w, (2, 3, 1, 0)).reshape(kh * kw * cin, cout)
           * scale[None, :]).astype(jnp.bfloat16)
    patches, oh, ow = _im2col(x.astype(jnp.bfloat16), kh, kw, sh, sw, ph, pw)
    out = _matmul_bias_relu(patches, w2d, bias)
    return out.reshape(n, oh, ow, cout)


def _basic_conv(x, p, stride=(1, 1), padding=(0, 0)):
    return _conv_bn_relu(x, p["w"], *p["bn"], stride=stride, padding=padding)


# Fused group of 1x1/s1/p0 BasicConv2d layers sharing one input -> one matmul.
@jax.jit
def _conv1x1_group_impl(x, ws, bns):
    n, h, w_, cin = x.shape
    w2ds, biases = [], []
    for w, (gamma, beta, mean, var) in zip(ws, bns):
        scale, bias = _fold_bn(gamma, beta, mean, var)
        cout = w.shape[0]
        w2ds.append(w.reshape(cout, cin).T * scale[None, :])
        biases.append(bias)
    W = jnp.concatenate(w2ds, axis=1).astype(jnp.bfloat16)
    B = jnp.concatenate(biases, axis=0)
    out = _matmul_bias_relu(x.reshape(n * h * w_, cin).astype(jnp.bfloat16), W, B)
    return out.reshape(n, h, w_, -1)


def _fused_1x1(x, plist):
    out = _conv1x1_group_impl(x, tuple(p["w"] for p in plist),
                              tuple(p["bn"] for p in plist))
    res, off = [], 0
    for p in plist:
        c = p["w"].shape[0]
        res.append(out[..., off:off + c])
        off += c
    return res


# ----------------------------------------------------------------------------
# Pooling: tap-wise running max / sum (no 9x stacked HBM tensor)
# ----------------------------------------------------------------------------
@functools.partial(jax.jit, static_argnames=("ksize", "stride", "padding", "mode"))
def _pool2d(x, *, ksize, stride, padding, mode):
    kh, kw = ksize
    sh, sw = stride
    ph, pw = padding
    n, h, w_, c = x.shape
    oh = (h + 2 * ph - kh) // sh + 1
    ow = (w_ + 2 * pw - kw) // sw + 1
    pad_val = float(jnp.finfo(x.dtype).min) if mode == "max" else 0.0
    xp = jnp.pad(x, ((0, 0), (ph, ph), (pw, pw), (0, 0)),
                 constant_values=pad_val)
    acc = None
    for dy in range(kh):
        for dx in range(kw):
            tap = xp[:, dy:dy + (oh - 1) * sh + 1:sh,
                        dx:dx + (ow - 1) * sw + 1:sw, :]
            if acc is None:
                acc = tap if mode == "max" else tap.astype(jnp.float32)
            else:
                acc = jnp.maximum(acc, tap) if mode == "max" else acc + tap
    if mode == "avg":                     # count_include_pad=True semantics
        acc = (acc / float(kh * kw)).astype(x.dtype)
    return acc


# ----------------------------------------------------------------------------
# Inception blocks (torchvision layouts, with fused 1x1 heads)
# ----------------------------------------------------------------------------
def _inception_a_fwd(x, p):
    b1, b5, b3 = _fused_1x1(x, [p["b1x1"], p["b5x5_1"], p["b3x3dbl_1"]])
    b5 = _basic_conv(b5, p["b5x5_2"], padding=(2, 2))
    b3 = _basic_conv(b3, p["b3x3dbl_2"], padding=(1, 1))
    b3 = _basic_conv(b3, p["b3x3dbl_3"], padding=(1, 1))
    bp = _pool2d(x, ksize=(3, 3), stride=(1, 1), padding=(1, 1), mode="avg")
    bp = _basic_conv(bp, p["bpool"])
    return jnp.concatenate([b1, b5, b3, bp], axis=-1)


def _inception_b_fwd(x, p):
    b3 = _basic_conv(x, p["b3x3"], stride=(2, 2))
    bd = _basic_conv(x, p["b3x3dbl_1"])
    bd = _basic_conv(bd, p["b3x3dbl_2"], padding=(1, 1))
    bd = _basic_conv(bd, p["b3x3dbl_3"], stride=(2, 2))
    bp = _pool2d(x, ksize=(3, 3), stride=(2, 2), padding=(0, 0), mode="max")
    return jnp.concatenate([b3, bd, bp], axis=-1)


def _inception_c_fwd(x, p):
    b1, b7, bd = _fused_1x1(x, [p["b1x1"], p["b7x7_1"], p["b7x7dbl_1"]])
    b7 = _basic_conv(b7, p["b7x7_2"], padding=(0, 3))
    b7 = _basic_conv(b7, p["b7x7_3"], padding=(3, 0))
    bd = _basic_conv(bd, p["b7x7dbl_2"], padding=(3, 0))
    bd = _basic_conv(bd, p["b7x7dbl_3"], padding=(0, 3))
    bd = _basic_conv(bd, p["b7x7dbl_4"], padding=(3, 0))
    bd = _basic_conv(bd, p["b7x7dbl_5"], padding=(0, 3))
    bp = _pool2d(x, ksize=(3, 3), stride=(1, 1), padding=(1, 1), mode="avg")
    bp = _basic_conv(bp, p["bpool"])
    return jnp.concatenate([b1, b7, bd, bp], axis=-1)


def _inception_d_fwd(x, p):
    b3, b7 = _fused_1x1(x, [p["b3x3_1"], p["b7x7x3_1"]])
    b3 = _basic_conv(b3, p["b3x3_2"], stride=(2, 2))
    b7 = _basic_conv(b7, p["b7x7x3_2"], padding=(0, 3))
    b7 = _basic_conv(b7, p["b7x7x3_3"], padding=(3, 0))
    b7 = _basic_conv(b7, p["b7x7x3_4"], stride=(2, 2))
    bp = _pool2d(x, ksize=(3, 3), stride=(2, 2), padding=(0, 0), mode="max")
    return jnp.concatenate([b3, b7, bp], axis=-1)


def _inception_e_fwd(x, p):
    b1, b3, bd = _fused_1x1(x, [p["b1x1"], p["b3x3_1"], p["b3x3dbl_1"]])
    b3 = jnp.concatenate([
        _basic_conv(b3, p["b3x3_2a"], padding=(0, 1)),
        _basic_conv(b3, p["b3x3_2b"], padding=(1, 0)),
    ], axis=-1)
    bd = _basic_conv(bd, p["b3x3dbl_2"], padding=(1, 1))
    bd = jnp.concatenate([
        _basic_conv(bd, p["b3x3dbl_3a"], padding=(0, 1)),
        _basic_conv(bd, p["b3x3dbl_3b"], padding=(1, 0)),
    ], axis=-1)
    bp = _pool2d(x, ksize=(3, 3), stride=(1, 1), padding=(1, 1), mode="avg")
    bp = _basic_conv(bp, p["bpool"])
    return jnp.concatenate([b1, b3, bd, bp], axis=-1)


# ----------------------------------------------------------------------------
# Full forward (matches Inceptionv3Fc.forward)
# ----------------------------------------------------------------------------
def inception_v3_forward(x_nchw, params):
    x = jnp.transpose(x_nchw, (0, 2, 3, 1)).astype(jnp.bfloat16)   # NCHW->NHWC
    x = _basic_conv(x, params["Conv2d_1a_3x3"], stride=(2, 2))
    x = _basic_conv(x, params["Conv2d_2a_3x3"])
    x = _basic_conv(x, params["Conv2d_2b_3x3"], padding=(1, 1))
    x = _pool2d(x, ksize=(3, 3), stride=(2, 2), padding=(0, 0), mode="max")
    x = _basic_conv(x, params["Conv2d_3b_1x1"])
    x = _basic_conv(x, params["Conv2d_4a_3x3"])
    x = _pool2d(x, ksize=(3, 3), stride=(2, 2), padding=(0, 0), mode="max")
    x = _inception_a_fwd(x, params["Mixed_5b"])
    x = _inception_a_fwd(x, params["Mixed_5c"])
    x = _inception_a_fwd(x, params["Mixed_5d"])
    x = _inception_b_fwd(x, params["Mixed_6a"])
    x = _inception_c_fwd(x, params["Mixed_6b"])
    x = _inception_c_fwd(x, params["Mixed_6c"])
    x = _inception_c_fwd(x, params["Mixed_6d"])
    x = _inception_c_fwd(x, params["Mixed_6e"])
    x = _inception_d_fwd(x, params["Mixed_7a"])
    x = _inception_e_fwd(x, params["Mixed_7b"])
    x = _inception_e_fwd(x, params["Mixed_7c"])
    x = _pool2d(x, ksize=(5, 5), stride=(5, 5), padding=(0, 0), mode="avg")
    n = x.shape[0]
    # x.view(x.size(0), -1) on NCHW layout:
    feat = jnp.transpose(x, (0, 3, 1, 2)).reshape(n, -1)
    return feat.astype(jnp.float32)


# ----------------------------------------------------------------------------
# Deterministic synthetic parameters (Inception-v3 shapes)
# ----------------------------------------------------------------------------
def _conv_init(key, cout, cin, kh, kw):
    std = (2.0 / (cin * kh * kw)) ** 0.5
    return std * jax.random.normal(key, (cout, cin, kh, kw), jnp.float32)


def _bn_init(key, c):
    k1, k2, k3, k4 = jax.random.split(key, 4)
    gamma = 1.0 + 0.1 * jax.random.normal(k1, (c,), jnp.float32)
    beta = 0.1 * jax.random.normal(k2, (c,), jnp.float32)
    mean = 0.1 * jax.random.normal(k3, (c,), jnp.float32)
    var = jnp.abs(1.0 + 0.1 * jax.random.normal(k4, (c,), jnp.float32))
    return gamma, beta, mean, var


def init_inception_v3_params(seed=0):
    root = jax.random.PRNGKey(seed)
    counter = [0]

    def nk():
        counter[0] += 1
        return jax.random.fold_in(root, counter[0])

    def conv(cin, cout, kh, kw):
        return {"w": _conv_init(nk(), cout, cin, kh, kw), "bn": _bn_init(nk(), cout)}

    def inception_a(cin, pool_feat):
        return {"b1x1": conv(cin, 64, 1, 1),
                "b5x5_1": conv(cin, 48, 1, 1), "b5x5_2": conv(48, 64, 5, 5),
                "b3x3dbl_1": conv(cin, 64, 1, 1), "b3x3dbl_2": conv(64, 96, 3, 3),
                "b3x3dbl_3": conv(96, 96, 3, 3),
                "bpool": conv(cin, pool_feat, 1, 1)}

    def inception_b(cin):
        return {"b3x3": conv(cin, 384, 3, 3),
                "b3x3dbl_1": conv(cin, 64, 1, 1), "b3x3dbl_2": conv(64, 96, 3, 3),
                "b3x3dbl_3": conv(96, 96, 3, 3)}

    def inception_c(cin, c7):
        return {"b1x1": conv(cin, 192, 1, 1),
                "b7x7_1": conv(cin, c7, 1, 1), "b7x7_2": conv(c7, c7, 1, 7),
                "b7x7_3": conv(c7, 192, 7, 1),
                "b7x7dbl_1": conv(cin, c7, 1, 1), "b7x7dbl_2": conv(c7, c7, 7, 1),
                "b7x7dbl_3": conv(c7, c7, 1, 7), "b7x7dbl_4": conv(c7, c7, 7, 1),
                "b7x7dbl_5": conv(c7, 192, 1, 7),
                "bpool": conv(cin, 192, 1, 1)}

    def inception_d(cin):
        return {"b3x3_1": conv(cin, 192, 1, 1), "b3x3_2": conv(192, 320, 3, 3),
                "b7x7x3_1": conv(cin, 192, 1, 1), "b7x7x3_2": conv(192, 192, 1, 7),
                "b7x7x3_3": conv(192, 192, 7, 1), "b7x7x3_4": conv(192, 192, 3, 3)}

    def inception_e(cin):
        return {"b1x1": conv(cin, 320, 1, 1),
                "b3x3_1": conv(cin, 384, 1, 1), "b3x3_2a": conv(384, 384, 1, 3),
                "b3x3_2b": conv(384, 384, 3, 1),
                "b3x3dbl_1": conv(cin, 448, 1, 1), "b3x3dbl_2": conv(448, 384, 3, 3),
                "b3x3dbl_3a": conv(384, 384, 1, 3), "b3x3dbl_3b": conv(384, 384, 3, 1),
                "bpool": conv(cin, 192, 1, 1)}

    params = {
        "Conv2d_1a_3x3": conv(3, 32, 3, 3),
        "Conv2d_2a_3x3": conv(32, 32, 3, 3),
        "Conv2d_2b_3x3": conv(32, 64, 3, 3),
        "Conv2d_3b_1x1": conv(64, 80, 1, 1),
        "Conv2d_4a_3x3": conv(80, 192, 3, 3),
        "Mixed_5b": inception_a(192, 32),
        "Mixed_5c": inception_a(256, 64),
        "Mixed_5d": inception_a(288, 64),
        "Mixed_6a": inception_b(288),
        "Mixed_6b": inception_c(768, 128),
        "Mixed_6c": inception_c(768, 160),
        "Mixed_6d": inception_c(768, 160),
        "Mixed_6e": inception_c(768, 192),
        "Mixed_7a": inception_d(768),
        "Mixed_7b": inception_e(1280),
        "Mixed_7c": inception_e(2048),
    }
    return params


# ----------------------------------------------------------------------------
if __name__ == "__main__":
    key = jax.random.PRNGKey(0)
    # Smallest input the module's forward admits: the no-pad stem + three
    # stride-2 reductions + AvgPool2d(kernel=5) require spatial >= 203.
    x = jax.random.normal(key, (2, 3, 203, 203), jnp.float32)

    params = init_inception_v3_params(seed=0)
    feats = inception_v3_forward(x, params)
    feats = jax.block_until_ready(feats)

    assert feats.shape == (2, 2048), feats.shape        # output_num() == 2048
    assert bool(jnp.all(jnp.isfinite(feats)))
    print("KERNEL_OK")
</pallas_src>

<mosaic_0001>
module attributes {stable_mosaic.version = 11 : i64} {
  func.func @_matmul_bias_relu_kernel(%arg0: i32, %arg1: i32, %arg2: memref<1024x32xbf16, #tpu.memory_space<vmem>>, %arg3: memref<32x32xbf16, #tpu.memory_space<vmem>>, %arg4: memref<1x32xf32, #tpu.memory_space<vmem>>, %arg5: memref<1024x32xbf16, #tpu.memory_space<vmem>>) attributes {dimension_semantics = [#tpu.dimension_semantics<parallel>, #tpu.dimension_semantics<parallel>], iteration_bounds = array<i64: 20, 1>, scalar_prefetch = 0 : i64, scratch_operands = 0 : i64, tpu.core_type = #tpu.core_type<tc>, window_params = [{transform_indices = @transform_0, window_bounds = array<i64: 1024, 32>}, {transform_indices = @transform_1, window_bounds = array<i64: 32, 32>}, {transform_indices = @transform_2, window_bounds = array<i64: 1, 32>}, {transform_indices = @transform_3, window_bounds = array<i64: 1024, 32>}]} {
    %c0 = arith.constant 0 : index
    %c0_0 = arith.constant 0 : index
    %0 = vector.load %arg2[%c0, %c0_0] : memref<1024x32xbf16, #tpu.memory_space<vmem>>, vector<1024x32xbf16>
    %c0_1 = arith.constant 0 : index
    %c0_2 = arith.constant 0 : index
    %1 = vector.load %arg3[%c0_1, %c0_2] : memref<32x32xbf16, #tpu.memory_space<vmem>>, vector<32x32xbf16>
    %cst = arith.constant dense<0.000000e+00> : vector<1024x32xf32>
    %2 = tpu.matmul %0, %1, %cst {dimension_numbers = #tpu.dot_dimension_numbers<[1], [0], [0], [1], [0, 0, 1, 1], [], []>} : vector<1024x32xbf16>, vector<32x32xbf16>, vector<1024x32xf32> -> vector<1024x32xf32>
    %c0_3 = arith.constant 0 : index
    %c0_4 = arith.constant 0 : index
    %3 = vector.load %arg4[%c0_3, %c0_4] : memref<1x32xf32, #tpu.memory_space<vmem>>, vector<1x32xf32>
    %4 = vector.broadcast %3 : vector<1x32xf32> to vector<1024x32xf32>
    %5 = arith.addf %2, %4 : vector<1024x32xf32>
    %cst_5 = arith.constant 0.000000e+00 : f32
    %6 = vector.broadcast %cst_5 : f32 to vector<1024x32xf32>
    %7 = arith.maximumf %5, %6 : vector<1024x32xf32>
    %8 = arith.truncf %7 : vector<1024x32xf32> to vector<1024x32xbf16>
    %c0_6 = arith.constant 0 : index
    %c0_7 = arith.constant 0 : index
    %9 = vector.load %arg5[%c0_6, %c0_7] : memref<1024x32xbf16, #tpu.memory_space<vmem>>, vector<1024x32xbf16>
    tpu.vector_store %arg5[%c0_6, %c0_7], %8 {strides = array<i32>} : memref<1024x32xbf16, #tpu.memory_space<vmem>>, vector<1024x32xbf16>,
    return
  }
  func.func @transform_0(%arg0: i32, %arg1: i32) -> (i32, i32) {
    %c0_i32 = arith.constant 0 : i32
    %c0_i32_0 = arith.constant 0 : i32
    return %arg0, %c0_i32 : i32, i32
  }
  func.func @transform_1(%arg0: i32, %arg1: i32) -> (i32, i32) {
    %c0_i32 = arith.constant 0 : i32
    %c0_i32_0 = arith.constant 0 : i32
    return %c0_i32, %arg1 : i32, i32
  }
  func.func @transform_2(%arg0: i32, %arg1: i32) -> (i32, i32) {
    %c0_i32 = arith.constant 0 : i32
    %c0_i32_0 = arith.constant 0 : i32
    return %c0_i32, %arg1 : i32, i32
  }
  func.func @transform_3(%arg0: i32, %arg1: i32) -> (i32, i32) {
    %c0_i32 = arith.constant 0 : i32
    return %arg0, %arg1 : i32, i32
  }
}

</mosaic_0001>

<llo_original>
// kernel: _conv_bn_relu.1
$region0: #{_conv_bn_relu.1}
  #allocation0 [shape = 'u32[]', space=smem, size = 0x4, offset = 0x4, fixed_abs, tag = 'smem constant byte address 0x4 - core index']
  #allocation1 [shape = 'u32[144,128]{1,0:T(1,128)}', space=vmem, size = 0x12000, scoped, tag = 'internal scratch']
  %s0 = inlined_call_operand.vmem [shape: bf16[20402,32], index: 0, kind: input, shape index: {}]
  %s1 = inlined_call_operand.vmem [shape: bf16[32,32], index: 1, kind: input, shape index: {}]
  %s2 = inlined_call_operand.vmem [shape: f32[1,32], index: 2, kind: input, shape index: {}]
  %s3 = inlined_call_operand.vmem [shape: bf16[20402,32], index: 3, kind: output, shape index: {}]
  %s4 = sld [smem:[#allocation0]]
  $region89: #{_conv_bn_relu.1} parent=0
    _
  %s6 = ssub.s32 1, %s4
  %s7 = scalar_select 0, %s6, %s4
  $region1: #{_conv_bn_relu.1} parent=0
    #allocation2 [shape = 'u8[524288]{0}', space=vmem, size = 0x80000, scoped, tag = 'output window, operand 0']
    loop: start=0, step=1, limit=22
    $region2: #{_conv_bn_relu.1} parent=1 // loop_pre_header
      _
    $region3: #{_conv_bn_relu.1} parent=1 // loop_header
      %s9 = sphi 0, %s13
      %p10 = scmp.ge.s32.totalorder %s9, 22
      %s16 = sphi 0, %s28
      %s17 = sphi 0, %s24
      %s18 = sphi 0, %s16
      %s19 = sphi 0, %s17
      %s20 = sphi 0, %s18
      %s21 = sphi 0, %s19
      %s31 = sphi 0, %s33
      %s34 = sphi 0, %s31
      %s35 = sphi 0, %s34
      %s51 = sphi 0, %s35
      %s57 = sphi 0, %s59
      %s60 = sphi 0, %s57
      %s61 = sphi 0, %s60
      %s77 = sphi 0, %s61
      %s83 = sphi 0, %s85
      %s86 = sphi 0, %s83
      %s87 = sphi 0, %s86
      %s103 = sphi 0, %s87
      %s111 = sphi 0, %s113
      %s114 = sphi 0, %s111
      %s115 = sphi 0, %s114
      %s131 = sphi 0, %s115
    $region4: #{_conv_bn_relu.1} parent=1 // loop_header_branch
      %12 = sbr.rel (%p10) target = $region8
    $region5: #{_conv_bn_relu.1} parent=1 // loop_body
      %s14 = ssub.s32 %s9, 1
      %s15 = ssub.s32 %s9, 2
      %s22 = sadd.s32 1, %s17
      %p23 = scmp.ge.s32.totalorder %s22, 1
      %s24 = scalar_select %p23, 0, %s22
      %s25 = sadd.s32 1, %s16
      %s26 = scalar_select %p23, %s25, %s16
      %p27 = scmp.ge.s32.totalorder %s26, 20
      %s28 = scalar_select %p27, 0, %s26
      %s29 = ssub.s32 %s16, %s28
      %p30 = scmp.eq.s32.totalorder %s29, 0
      %s32 = sadd.s32 %s31, 1
      %s33 = scalar_select %p30, %s31, %s32
      %p36 = pneg %p30
      %p37 = scmp.eq.s32.totalorder %s9, 19
      %p38 = por %p36, %p37
      %p39 = scmp.ne.s32.totalorder %s31, %s34
      %p40 = scmp.eq.s32.totalorder %s9, 0
      %p41 = por %p39, %p40
      %p42 = scmp.ne.s32.totalorder %s31, %s34
      %p43 = scmp.eq.s32.totalorder %s14, 19
      %p44 = por %p42, %p43
      %p45 = scmp.ne.s32.totalorder %s34, %s35
      %p46 = scmp.eq.s32.totalorder %s14, 0
      %p47 = por %p45, %p46
      %p48 = scmp.ne.s32.totalorder %s34, %s35
      %p49 = scmp.eq.s32.totalorder %s15, 19
      %p50 = por %p48, %p49
      %p52 = scmp.ne.s32.totalorder %s35, %s51
      %p53 = scmp.eq.s32.totalorder %s15, 0
      %p54 = por %p52, %p53
      %s55 = ssub.s32 %s17, %s24
      %p56 = scmp.eq.s32.totalorder %s55, 0
      %s58 = sadd.s32 %s57, 1
      %s59 = scalar_select %p56, %s57, %s58
      %p62 = pneg %p56
      %p63 = scmp.eq.s32.totalorder %s9, 19
      %p64 = por %p62, %p63
      %p65 = scmp.ne.s32.totalorder %s57, %s60
      %p66 = scmp.eq.s32.totalorder %s9, 0
      %p67 = por %p65, %p66
      %p68 = scmp.ne.s32.totalorder %s57, %s60
      %p69 = scmp.eq.s32.totalorder %s14, 19
      %p70 = por %p68, %p69
      %p71 = scmp.ne.s32.totalorder %s60, %s61
      %p72 = scmp.eq.s32.totalorder %s14, 0
      %p73 = por %p71, %p72
      %p74 = scmp.ne.s32.totalorder %s60, %s61
      %p75 = scmp.eq.s32.totalorder %s15, 19
      %p76 = por %p74, %p75
      %p78 = scmp.ne.s32.totalorder %s61, %s77
      %p79 = scmp.eq.s32.totalorder %s15, 0
      %p80 = por %p78, %p79
      %s81 = ssub.s32 %s17, %s24
      %p82 = scmp.eq.s32.totalorder %s81, 0
      %s84 = sadd.s32 %s83, 1
      %s85 = scalar_select %p82, %s83, %s84
      %p88 = pneg %p82
      %p89 = scmp.eq.s32.totalorder %s9, 19
      %p90 = por %p88, %p89
      %p91 = scmp.ne.s32.totalorder %s83, %s86
      %p92 = scmp.eq.s32.totalorder %s9, 0
      %p93 = por %p91, %p92
      %p94 = scmp.ne.s32.totalorder %s83, %s86
      %p95 = scmp.eq.s32.totalorder %s14, 19
      %p96 = por %p94, %p95
      %p97 = scmp.ne.s32.totalorder %s86, %s87
      %p98 = scmp.eq.s32.totalorder %s14, 0
      %p99 = por %p97, %p98
      %p100 = scmp.ne.s32.totalorder %s86, %s87
      %p101 = scmp.eq.s32.totalorder %s15, 19
      %p102 = por %p100, %p101
      %p104 = scmp.ne.s32.totalorder %s87, %s103
      %p105 = scmp.eq.s32.totalorder %s15, 0
      %p106 = por %p104, %p105
      %s107 = ssub.s32 %s16, %s28
      %s108 = ssub.s32 %s17, %s24
      %s109 = sor.u32 %s107, %s108
      %p110 = scmp.eq.s32.totalorder %s109, 0
      %s112 = sadd.s32 %s111, 1
      %s113 = scalar_select %p110, %s111, %s112
      %p116 = pneg %p110
      %p117 = scmp.eq.s32.totalorder %s9, 19
      %p118 = por %p116, %p117
      %p119 = scmp.ne.s32.totalorder %s111, %s114
      %p120 = scmp.eq.s32.totalorder %s9, 0
      %p121 = por %p119, %p120
      %p122 = scmp.ne.s32.totalorder %s111, %s114
      %p123 = scmp.eq.s32.totalorder %s14, 19
      %p124 = por %p122, %p123
      %p125 = scmp.ne.s32.totalorder %s114, %s115
      %p126 = scmp.eq.s32.totalorder %s14, 0
      %p127 = por %p125, %p126
      %p128 = scmp.ne.s32.totalorder %s114, %s115
      %p129 = scmp.eq.s32.totalorder %s15, 19
      %p130 = por %p128, %p129
      %p132 = scmp.ne.s32.totalorder %s115, %s131
      %p133 = scmp.eq.s32.totalorder %s15, 0
      %p134 = por %p132, %p133
      %p135 = scmp.le.s32.totalorder 1, %s9
      %p136 = scmp.lt.s32.totalorder %s9, 21
      %p137 = pnand %p135, %p136
      %p138 = pneg %p137
      // Predicated region
      $region9: #{_conv_bn_relu.1} parent=5 // pred_check
        _
      $region10: #{_conv_bn_relu.1} parent=5 // pred_check_branch
        %140 = sbr.rel (%p137) target = $region12
      $region11: #{_conv_bn_relu.1} parent=5 // pred_region
        %s141 = ssub.s32 %s9, 1
        // Predicated region
        $region13: #{_conv_bn_relu.1} parent=11 // pred_check
          %p142 = pneg %p73
        $region14: #{_conv_bn_relu.1} parent=11 // pred_check_branch
          %144 = sbr.rel (%p142) target = $region16
        $region15: #{_conv_bn_relu.1} parent=11 // pred_region
          %p145 = scmp.lt.s32.totalorder %s19, 0
          %s146 = scalar_select %p145, %s19, 0
          %s147 = smul.addr %s146, 4
          %s148 = scalar_lea.vmem %s1, %s147
        $region16: #{_conv_bn_relu.1} parent=11 // pred_fallthru
          _
        // Predicated region
        $region17: #{_conv_bn_relu.1} parent=11 // pred_check
          %p149 = pneg %p99
        $region18: #{_conv_bn_relu.1} parent=11 // pred_check_branch
          %151 = sbr.rel (%p149) target = $region20
        $region19: #{_conv_bn_relu.1} parent=11 // pred_region
          %p152 = scmp.lt.s32.totalorder %s19, 0
          %s153 = scalar_select %p152, %s19, 0
          %s154 = scalar_lea.vmem %s2, %s153
        $region20: #{_conv_bn_relu.1} parent=11 // pred_fallthru
          _
      $region12: #{_conv_bn_relu.1} parent=5 // pred_fallthru
        _
      %p155 = scmp.lt.s32.totalorder %s9, 20
      // Predicated region
      $region21: #{_conv_bn_relu.1} parent=5 // pred_check
        %p156 = pneg %p155
      $region22: #{_conv_bn_relu.1} parent=5 // pred_check_branch
        %158 = sbr.rel (%p156) target = $region24
      $region23: #{_conv_bn_relu.1} parent=5 // pred_region
        // Predicated region
        $region25: #{_conv_bn_relu.1} parent=23 // pred_check
          %p159 = pneg %p41
        $region26: #{_conv_bn_relu.1} parent=23 // pred_check_branch
          %161 = sbr.rel (%p159) target = $region28
        $region27: #{_conv_bn_relu.1} parent=23 // pred_region
          %s162 = smul.u32 128, %s16
          %s163 = ssub.s32 2551, %s162
          %p164 = scmp.lt.s32.totalorder %s163, 128
          %s165 = scalar_select %p164, %s163, 128
          %s166 = smul.u32 64, %s165
          %p167 = scmp.lt.s32.totalorder %s162, 2550
          %s168 = scalar_select %p167, %s162, 2550
          %s169 = smul.addr %s168, 4
          %s170 = scalar_lea.vmem %s0, %s169
          %s171 = smul.u32 128, %s16
          %s172 = ssub.s32 2551, %s171
          %p173 = scmp.lt.s32.totalorder %s172, 128
          %s174 = scalar_select %p173, %s172, 128
          %s175 = smul.u32 64, %s174
        $region28: #{_conv_bn_relu.1} parent=23 // pred_fallthru
          _
      $region24: #{_conv_bn_relu.1} parent=5 // pred_fallthru
        _
      %p176 = scmp.le.s32.totalorder 1, %s9
      %p177 = scmp.lt.s32.totalorder %s9, 21
      %p178 = pnand %p176, %p177
      %p179 = pneg %p178
      // Predicated region
      $region29: #{_conv_bn_relu.1} parent=5 // pred_check
        _
      $region30: #{_conv_bn_relu.1} parent=5 // pred_check_branch
        %181 = sbr.rel (%p178) target = $region32
      $region31: #{_conv_bn_relu.1} parent=5 // pred_region
        %s182 = ssub.s32 %s9, 1
        %s183 = smul.u32 128, %s18
        %s184 = ssub.s32 2551, %s183
        %p185 = scmp.lt.s32.totalorder %s184, 128
        %s186 = scalar_select %p185, %s184, 128
        %s187 = smul.u32 64, %s186
        %p188 = scmp.lt.s32.totalorder %s183, 2550
        %s189 = scalar_select %p188, %s183, 2550
        %s190 = smul.addr %s189, 4
        %s191 = scalar_lea.vmem %s0, %s190
        %p192 = pneg %p47
        %p193 = pneg %p44
        %p194 = scmp.lt.s32.totalorder %s19, 0
        %s195 = scalar_select %p194, %s19, 0
        %s196 = smul.addr %s195, 4
        %s197 = scalar_lea.vmem %s1, %s196
        %p198 = pneg %p73
        %p199 = pneg %p70
        %p200 = scmp.lt.s32.totalorder %s19, 0
        %s201 = scalar_select %p200, %s19, 0
        %s202 = scalar_lea.vmem %s2, %s201
        %p203 = pneg %p99
        %p204 = pneg %p96
        %p205 = pneg %p127
        %p206 = pneg %p124
        %s207 = sand.u32 %s114, 1
        %s208 = sand.u32 %s114, 1
        %s209 = smul.addr %s208, 512
        %s210 = scalar_lea.vmem [#allocation2], %s209
        %s211 = smul.u32 128, %s18
        %s212 = ssub.s32 2551, %s211
        %p213 = scmp.lt.s32.totalorder %s212, 128
        %s214 = scalar_select %p213, %s212, 128
        %s215 = smul.u32 64, %s214
        %p216 = scmp.lt.s32.totalorder %s211, 2550
        %s217 = scalar_select %p216, %s211, 2550
        %s218 = smul.addr %s217, 4
        %s219 = scalar_lea.vmem %s0, %s218
        %s220 = smul.u32 128, %s18
        %s221 = ssub.s32 2551, %s220
        %p222 = scmp.lt.s32.totalorder %s221, 128
        %s223 = scalar_select %p222, %s221, 128
        %s224 = smul.u32 64, %s223
        %p225 = scmp.lt.s32.totalorder %s19, 0
        %s226 = scalar_select %p225, %s19, 0
        %s227 = smul.addr %s226, 4
        %s228 = scalar_lea.vmem %s1, %s227
        %p229 = scmp.lt.s32.totalorder %s19, 0
        %s230 = scalar_select %p229, %s19, 0
        %s231 = scalar_lea.vmem %s2, %s230
        %s232 = smul.u32 128, %s18
        %s233 = ssub.s32 2551, %s232
        %p234 = scmp.lt.s32.totalorder %s233, 128
        %s235 = scalar_select %p234, %s233, 128
        %s236 = smul.u32 64, %s235
        %v238 = vld [vmem:[%s219] sm:$0xf]
        %v239 = vld [vmem:[%s219 + $0x4] sm:$0xf]
        %v240 = vld [vmem:[%s219 + $0x8] sm:$0xf]
        %v241 = vld [vmem:[%s219 + $0xc] sm:$0xf]
        %v242 = vld [vmem:[%s219 + $0x10] sm:$0xf]
        %v243 = vld [vmem:[%s219 + $0x14] sm:$0xf]
        %v244 = vld [vmem:[%s219 + $0x18] sm:$0xf]
        %v245 = vld [vmem:[%s219 + $0x1c] sm:$0xf]
        %v246 = vld [vmem:[%s219 + $0x20] sm:$0xf]
        %v247 = vld [vmem:[%s219 + $0x24] sm:$0xf]
        %v248 = vld [vmem:[%s219 + $0x28] sm:$0xf]
        %v249 = vld [vmem:[%s219 + $0x2c] sm:$0xf]
        %v250 = vld [vmem:[%s219 + $0x30] sm:$0xf]
        %v251 = vld [vmem:[%s219 + $0x34] sm:$0xf]
        %v252 = vld [vmem:[%s219 + $0x38] sm:$0xf]
        %v253 = vld [vmem:[%s219 + $0x3c] sm:$0xf]
        %v254 = vld [vmem:[%s219 + $0x40] sm:$0xf]
        %v255 = vld [vmem:[%s219 + $0x44] sm:$0xf]
        %v256 = vld [vmem:[%s219 + $0x48] sm:$0xf]
        %v257 = vld [vmem:[%s219 + $0x4c] sm:$0xf]
        %v258 = vld [vmem:[%s219 + $0x50] sm:$0xf]
        %v259 = vld [vmem:[%s219 + $0x54] sm:$0xf]
        %v260 = vld [vmem:[%s219 + $0x58] sm:$0xf]
        %v261 = vld [vmem:[%s219 + $0x5c] sm:$0xf]
        %v262 = vld [vmem:[%s219 + $0x60] sm:$0xf]
        %v263 = vld [vmem:[%s219 + $0x64] sm:$0xf]
        %v264 = vld [vmem:[%s219 + $0x68] sm:$0xf]
        %v265 = vld [vmem:[%s219 + $0x6c] sm:$0xf]
        %v266 = vld [vmem:[%s219 + $0x70] sm:$0xf]
        %v267 = vld [vmem:[%s219 + $0x74] sm:$0xf]
        %v268 = vld [vmem:[%s219 + $0x78] sm:$0xf]
        %v269 = vld [vmem:[%s219 + $0x7c] sm:$0xf]
        %v270 = vld [vmem:[%s219 + $0x80] sm:$0xf]
        %v271 = vld [vmem:[%s219 + $0x84] sm:$0xf]
        %v272 = vld [vmem:[%s219 + $0x88] sm:$0xf]
        %v273 = vld [vmem:[%s219 + $0x8c] sm:$0xf]
        %v274 = vld [vmem:[%s219 + $0x90] sm:$0xf]
        %v275 = vld [vmem:[%s219 + $0x94] sm:$0xf]
        %v276 = vld [vmem:[%s219 + $0x98] sm:$0xf]
        %v277 = vld [vmem:[%s219 + $0x9c] sm:$0xf]
        %v278 = vld [vmem:[%s219 + $0xa0] sm:$0xf]
        %v279 = vld [vmem:[%s219 + $0xa4] sm:$0xf]
        %v280 = vld [vmem:[%s219 + $0xa8] sm:$0xf]
        %v281 = vld [vmem:[%s219 + $0xac] sm:$0xf]
        %v282 = vld [vmem:[%s219 + $0xb0] sm:$0xf]
        %v283 = vld [vmem:[%s219 + $0xb4] sm:$0xf]
        %v284 = vld [vmem:[%s219 + $0xb8] sm:$0xf]
        %v285 = vld [vmem:[%s219 + $0xbc] sm:$0xf]
        %v286 = vld [vmem:[%s219 + $0xc0] sm:$0xf]
        %v287 = vld [vmem:[%s219 + $0xc4] sm:$0xf]
        %v288 = vld [vmem:[%s219 + $0xc8] sm:$0xf]
        %v289 = vld [vmem:[%s219 + $0xcc] sm:$0xf]
        %v290 = vld [vmem:[%s219 + $0xd0] sm:$0xf]
        %v291 = vld [vmem:[%s219 + $0xd4] sm:$0xf]
        %v292 = vld [vmem:[%s219 + $0xd8] sm:$0xf]
        %v293 = vld [vmem:[%s219 + $0xdc] sm:$0xf]
        %v294 = vld [vmem:[%s219 + $0xe0] sm:$0xf]
        %v295 = vld [vmem:[%s219 + $0xe4] sm:$0xf]
        %v296 = vld [vmem:[%s219 + $0xe8] sm:$0xf]
        %v297 = vld [vmem:[%s219 + $0xec] sm:$0xf]
        %v298 = vld [vmem:[%s219 + $0xf0] sm:$0xf]
        %v299 = vld [vmem:[%s219 + $0xf4] sm:$0xf]
        %v300 = vld [vmem:[%s219 + $0xf8] sm:$0xf]
        %v301 = vld [vmem:[%s219 + $0xfc] sm:$0xf]
        %v302 = vld [vmem:[%s219 + $0x100] sm:$0xf]
        %v303 = vld [vmem:[%s219 + $0x104] sm:$0xf]
        %v304 = vld [vmem:[%s219 + $0x108] sm:$0xf]
        %v305 = vld [vmem:[%s219 + $0x10c] sm:$0xf]
        %v306 = vld [vmem:[%s219 + $0x110] sm:$0xf]
        %v307 = vld [vmem:[%s219 + $0x114] sm:$0xf]
        %v308 = vld [vmem:[%s219 + $0x118] sm:$0xf]
        %v309 = vld [vmem:[%s219 + $0x11c] sm:$0xf]
        %v310 = vld [vmem:[%s219 + $0x120] sm:$0xf]
        %v311 = vld [vmem:[%s219 + $0x124] sm:$0xf]
        %v312 = vld [vmem:[%s219 + $0x128] sm:$0xf]
        %v313 = vld [vmem:[%s219 + $0x12c] sm:$0xf]
        %v314 = vld [vmem:[%s219 + $0x130] sm:$0xf]
        %v315 = vld [vmem:[%s219 + $0x134] sm:$0xf]
        %v316 = vld [vmem:[%s219 + $0x138] sm:$0xf]
        %v317 = vld [vmem:[%s219 + $0x13c] sm:$0xf]
        %v318 = vld [vmem:[%s219 + $0x140] sm:$0xf]
        %v319 = vld [vmem:[%s219 + $0x144] sm:$0xf]
        %v320 = vld [vmem:[%s219 + $0x148] sm:$0xf]
        %v321 = vld [vmem:[%s219 + $0x14c] sm:$0xf]
        %v322 = vld [vmem:[%s219 + $0x150] sm:$0xf]
        %v323 = vld [vmem:[%s219 + $0x154] sm:$0xf]
        %v324 = vld [vmem:[%s219 + $0x158] sm:$0xf]
        %v325 = vld [vmem:[%s219 + $0x15c] sm:$0xf]
        %v326 = vld [vmem:[%s219 + $0x160] sm:$0xf]
        %v327 = vld [vmem:[%s219 + $0x164] sm:$0xf]
        %v328 = vld [vmem:[%s219 + $0x168] sm:$0xf]
        %v329 = vld [vmem:[%s219 + $0x16c] sm:$0xf]
        %v330 = vld [vmem:[%s219 + $0x170] sm:$0xf]
        %v331 = vld [vmem:[%s219 + $0x174] sm:$0xf]
        %v332 = vld [vmem:[%s219 + $0x178] sm:$0xf]
        %v333 = vld [vmem:[%s219 + $0x17c] sm:$0xf]
        %v334 = vld [vmem:[%s219 + $0x180] sm:$0xf]
        %v335 = vld [vmem:[%s219 + $0x184] sm:$0xf]
        %v336 = vld [vmem:[%s219 + $0x188] sm:$0xf]
        %v337 = vld [vmem:[%s219 + $0x18c] sm:$0xf]
        %v338 = vld [vmem:[%s219 + $0x190] sm:$0xf]
        %v339 = vld [vmem:[%s219 + $0x194] sm:$0xf]
        %v340 = vld [vmem:[%s219 + $0x198] sm:$0xf]
        %v341 = vld [vmem:[%s219 + $0x19c] sm:$0xf]
        %v342 = vld [vmem:[%s219 + $0x1a0] sm:$0xf]
        %v343 = vld [vmem:[%s219 + $0x1a4] sm:$0xf]
        %v344 = vld [vmem:[%s219 + $0x1a8] sm:$0xf]
        %v345 = vld [vmem:[%s219 + $0x1ac] sm:$0xf]
        %v346 = vld [vmem:[%s219 + $0x1b0] sm:$0xf]
        %v347 = vld [vmem:[%s219 + $0x1b4] sm:$0xf]
        %v348 = vld [vmem:[%s219 + $0x1b8] sm:$0xf]
        %v349 = vld [vmem:[%s219 + $0x1bc] sm:$0xf]
        %v350 = vld [vmem:[%s219 + $0x1c0] sm:$0xf]
        %v351 = vld [vmem:[%s219 + $0x1c4] sm:$0xf]
        %v352 = vld [vmem:[%s219 + $0x1c8] sm:$0xf]
        %v353 = vld [vmem:[%s219 + $0x1cc] sm:$0xf]
        %v354 = vld [vmem:[%s219 + $0x1d0] sm:$0xf]
        %v355 = vld [vmem:[%s219 + $0x1d4] sm:$0xf]
        %v356 = vld [vmem:[%s219 + $0x1d8] sm:$0xf]
        %v357 = vld [vmem:[%s219 + $0x1dc] sm:$0xf]
        %v358 = vld [vmem:[%s219 + $0x1e0] sm:$0xf]
        %v359 = vld [vmem:[%s219 + $0x1e4] sm:$0xf]
        %v360 = vld [vmem:[%s219 + $0x1e8] sm:$0xf]
        %v361 = vld [vmem:[%s219 + $0x1ec] sm:$0xf]
        %v362 = vld [vmem:[%s219 + $0x1f0] sm:$0xf]
        %v363 = vld [vmem:[%s219 + $0x1f4] sm:$0xf]
        %v364 = vld [vmem:[%s219 + $0x1f8] sm:$0xf]
        %v365 = vld [vmem:[%s219 + $0x1fc] sm:$0xf]
        %v366 = vld [vmem:[%s228] sm:$0xf]
        %v367 = vld [vmem:[%s228 + $0x4] sm:$0xf]
        %v368 = vld [vmem:[%s228 + $0x8] sm:$0xf]
        %v369 = vld [vmem:[%s228 + $0xc] sm:$0xf]
        %v370 = vld [vmem:[%s231] sm:$0x1]
        %v372 = vlaneseq
        %v373 = vshrl.u32 %v372, 7
        %v374 = vsub.s32 0, %v373
        %v375 = vrot.slane %v370, %v374
        %v505 = vunpack.c.l.b16 %v238
        %v506 = vunpack.c.l.b16 %v239
        %v507 = vunpack.c.l.b16 %v240
        %v508 = vunpack.c.l.b16 %v241
        %v509 = vunpack.c.l.b16 %v242
        %v510 = vunpack.c.l.b16 %v243
        %v511 = vunpack.c.l.b16 %v244
        %v512 = vunpack.c.l.b16 %v245
        %v513 = vunpack.c.l.b16 %v246
        %v514 = vunpack.c.l.b16 %v247
        %v515 = vunpack.c.l.b16 %v248
        %v516 = vunpack.c.l.b16 %v249
        %v517 = vunpack.c.l.b16 %v250
        %v518 = vunpack.c.l.b16 %v251
        %v519 = vunpack.c.l.b16 %v252
        %v520 = vunpack.c.l.b16 %v253
        %v521 = vunpack.c.l.b16 %v254
        %v522 = vunpack.c.l.b16 %v255
        %v523 = vunpack.c.l.b16 %v256
        %v524 = vunpack.c.l.b16 %v257
        %v525 = vunpack.c.l.b16 %v258
        %v526 = vunpack.c.l.b16 %v259
        %v527 = vunpack.c.l.b16 %v260
        %v528 = vunpack.c.l.b16 %v261
        %v529 = vunpack.c.l.b16 %v262
        %v530 = vunpack.c.l.b16 %v263
        %v531 = vunpack.c.l.b16 %v264
        %v532 = vunpack.c.l.b16 %v265
        %v533 = vunpack.c.l.b16 %v266
        %v534 = vunpack.c.l.b16 %v267
        %v535 = vunpack.c.l.b16 %v268
        %v536 = vunpack.c.l.b16 %v269
        %v537 = vunpack.c.l.b16 %v270
        %v538 = vunpack.c.l.b16 %v271
        %v539 = vunpack.c.l.b16 %v272
        %v540 = vunpack.c.l.b16 %v273
        %v541 = vunpack.c.l.b16 %v274
        %v542 = vunpack.c.l.b16 %v275
        %v543 = vunpack.c.l.b16 %v276
        %v544 = vunpack.c.l.b16 %v277
        %v545 = vunpack.c.l.b16 %v278
        %v546 = vunpack.c.l.b16 %v279
        %v547 = vunpack.c.l.b16 %v280
        %v548 = vunpack.c.l.b16 %v281
        %v549 = vunpack.c.l.b16 %v282
        %v550 = vunpack.c.l.b16 %v283
        %v551 = vunpack.c.l.b16 %v284
        %v552 = vunpack.c.l.b16 %v285
        %v553 = vunpack.c.l.b16 %v286
        %v554 = vunpack.c.l.b16 %v287
        %v555 = vunpack.c.l.b16 %v288
        %v556 = vunpack.c.l.b16 %v289
        %v557 = vunpack.c.l.b16 %v290
        %v558 = vunpack.c.l.b16 %v291
        %v559 = vunpack.c.l.b16 %v292
        %v560 = vunpack.c.l.b16 %v293
        %v561 = vunpack.c.l.b16 %v294
        %v562 = vunpack.c.l.b16 %v295
        %v563 = vunpack.c.l.b16 %v296
        %v564 = vunpack.c.l.b16 %v297
        %v565 = vunpack.c.l.b16 %v298
        %v566 = vunpack.c.l.b16 %v299
        %v567 = vunpack.c.l.b16 %v300
        %v568 = vunpack.c.l.b16 %v301
        %v569 = vunpack.c.l.b16 %v302
        %v570 = vunpack.c.l.b16 %v303
        %v571 = vunpack.c.l.b16 %v304
        %v572 = vunpack.c.l.b16 %v305
        %v573 = vunpack.c.l.b16 %v306
        %v574 = vunpack.c.l.b16 %v307
        %v575 = vunpack.c.l.b16 %v308
        %v576 = vunpack.c.l.b16 %v309
        %v577 = vunpack.c.l.b16 %v310
        %v578 = vunpack.c.l.b16 %v311
        %v579 = vunpack.c.l.b16 %v312
        %v580 = vunpack.c.l.b16 %v313
        %v581 = vunpack.c.l.b16 %v314
        %v582 = vunpack.c.l.b16 %v315
        %v583 = vunpack.c.l.b16 %v316
        %v584 = vunpack.c.l.b16 %v317
        %v585 = vunpack.c.l.b16 %v318
        %v586 = vunpack.c.l.b16 %v319
        %v587 = vunpack.c.l.b16 %v320
        %v588 = vunpack.c.l.b16 %v321
        %v589 = vunpack.c.l.b16 %v322
        %v590 = vunpack.c.l.b16 %v323
        %v591 = vunpack.c.l.b16 %v324
        %v592 = vunpack.c.l.b16 %v325
        %v593 = vunpack.c.l.b16 %v326
        %v594 = vunpack.c.l.b16 %v327
        %v595 = vunpack.c.l.b16 %v328
        %v596 = vunpack.c.l.b16 %v329
        %v597 = vunpack.c.l.b16 %v330
        %v598 = vunpack.c.l.b16 %v331
        %v599 = vunpack.c.l.b16 %v332
        %v600 = vunpack.c.l.b16 %v333
        %v601 = vunpack.c.l.b16 %v334
        %v602 = vunpack.c.l.b16 %v335
        %v603 = vunpack.c.l.b16 %v336
        %v604 = vunpack.c.l.b16 %v337
        %v605 = vunpack.c.l.b16 %v338
        %v606 = vunpack.c.l.b16 %v339
        %v607 = vunpack.c.l.b16 %v340
        %v608 = vunpack.c.l.b16 %v341
        %v609 = vunpack.c.l.b16 %v342
        %v610 = vunpack.c.l.b16 %v343
        %v611 = vunpack.c.l.b16 %v344
        %v612 = vunpack.c.l.b16 %v345
        %v613 = vunpack.c.l.b16 %v346
        %v614 = vunpack.c.l.b16 %v347
        %v615 = vunpack.c.l.b16 %v348
        %v616 = vunpack.c.l.b16 %v349
        %v617 = vunpack.c.l.b16 %v350
        %v618 = vunpack.c.l.b16 %v351
        %v619 = vunpack.c.l.b16 %v352
        %v620 = vunpack.c.l.b16 %v353
        %v621 = vunpack.c.l.b16 %v354
        %v622 = vunpack.c.l.b16 %v355
        %v623 = vunpack.c.l.b16 %v356
        %v624 = vunpack.c.l.b16 %v357
        %v625 = vunpack.c.l.b16 %v358
        %v626 = vunpack.c.l.b16 %v359
        %v627 = vunpack.c.l.b16 %v360
        %v628 = vunpack.c.l.b16 %v361
        %v629 = vunpack.c.l.b16 %v362
        %v630 = vunpack.c.l.b16 %v363
        %v631 = vunpack.c.l.b16 %v364
        %v632 = vunpack.c.l.b16 %v365
        %v633 = vpack.c.b16 %v506, %v505
        %v634 = vpack.c.b16 %v508, %v507
        %v635 = vpack.c.b16 %v510, %v509
        %v636 = vpack.c.b16 %v512, %v511
        %v637 = vpack.c.b16 %v514, %v513
        %v638 = vpack.c.b16 %v516, %v515
        %v639 = vpack.c.b16 %v518, %v517
        %v640 = vpack.c.b16 %v520, %v519
        %v641 = vpack.c.b16 %v522, %v521
        %v642 = vpack.c.b16 %v524, %v523
        %v643 = vpack.c.b16 %v526, %v525
        %v644 = vpack.c.b16 %v528, %v527
        %v645 = vpack.c.b16 %v530, %v529
        %v646 = vpack.c.b16 %v532, %v531
        %v647 = vpack.c.b16 %v534, %v533
        %v648 = vpack.c.b16 %v536, %v535
        %v649 = vpack.c.b16 %v538, %v537
        %v650 = vpack.c.b16 %v540, %v539
        %v651 = vpack.c.b16 %v542, %v541
        %v652 = vpack.c.b16 %v544, %v543
        %v653 = vpack.c.b16 %v546, %v545
        %v654 = vpack.c.b16 %v548, %v547
        %v655 = vpack.c.b16 %v550, %v549
        %v656 = vpack.c.b16 %v552, %v551
        %v657 = vpack.c.b16 %v554, %v553
        %v658 = vpack.c.b16 %v556, %v555
        %v659 = vpack.c.b16 %v558, %v557
        %v660 = vpack.c.b16 %v560, %v559
        %v661 = vpack.c.b16 %v562, %v561
        %v662 = vpack.c.b16 %v564, %v563
        %v663 = vpack.c.b16 %v566, %v565
        %v664 = vpack.c.b16 %v568, %v567
        %v665 = vpack.c.b16 %v570, %v569
        %v666 = vpack.c.b16 %v572, %v571
        %v667 = vpack.c.b16 %v574, %v573
        %v668 = vpack.c.b16 %v576, %v575
        %v669 = vpack.c.b16 %v578, %v577
        %v670 = vpack.c.b16 %v580, %v579
        %v671 = vpack.c.b16 %v582, %v581
        %v672 = vpack.c.b16 %v584, %v583
        %v673 = vpack.c.b16 %v586, %v585
        %v674 = vpack.c.b16 %v588, %v587
        %v675 = vpack.c.b16 %v590, %v589
        %v676 = vpack.c.b16 %v592, %v591
        %v677 = vpack.c.b16 %v594, %v593
        %v678 = vpack.c.b16 %v596, %v595
        %v679 = vpack.c.b16 %v598, %v597
        %v680 = vpack.c.b16 %v600, %v599
        %v681 = vpack.c.b16 %v602, %v601
        %v682 = vpack.c.b16 %v604, %v603
        %v683 = vpack.c.b16 %v606, %v605
        %v684 = vpack.c.b16 %v608, %v607
        %v685 = vpack.c.b16 %v610, %v609
        %v686 = vpack.c.b16 %v612, %v611
        %v687 = vpack.c.b16 %v614, %v613
        %v688 = vpack.c.b16 %v616, %v615
        %v689 = vpack.c.b16 %v618, %v617
        %v690 = vpack.c.b16 %v620, %v619
        %v691 = vpack.c.b16 %v622, %v621
        %v692 = vpack.c.b16 %v624, %v623
        %v693 = vpack.c.b16 %v626, %v625
        %v694 = vpack.c.b16 %v628, %v627
        %v695 = vpack.c.b16 %v630, %v629
        %v696 = vpack.c.b16 %v632, %v631
        %v701 = vunpack.c.l.b16 %v366
        %v702 = vunpack.c.l.b16 %v367
        %v703 = vunpack.c.l.b16 %v368
        %v704 = vunpack.c.l.b16 %v369
        %v705 = vpack.c.b16 %v702, %v701
        %v706 = vpack.c.b16 %v704, %v703
        %vm709 = vcmask 261120
        %v711 = vsel %vm709, %v633, 0
        %v714 = vsel %vm709, %v634, 0
        %v717 = vsel %vm709, %v635, 0
        %v720 = vsel %vm709, %v636, 0
        %v723 = vsel %vm709, %v637, 0
        %v726 = vsel %vm709, %v638, 0
        %v729 = vsel %vm709, %v639, 0
        %v732 = vsel %vm709, %v640, 0
        %v735 = vsel %vm709, %v641, 0
        %v738 = vsel %vm709, %v642, 0
        %v741 = vsel %vm709, %v643, 0
        %v744 = vsel %vm709, %v644, 0
        %v747 = vsel %vm709, %v645, 0
        %v750 = vsel %vm709, %v646, 0
        %v753 = vsel %vm709, %v647, 0
        %v756 = vsel %vm709, %v648, 0
        %v759 = vsel %vm709, %v649, 0
        %v762 = vsel %vm709, %v650, 0
        %v765 = vsel %vm709, %v651, 0
        %v768 = vsel %vm709, %v652, 0
        %v771 = vsel %vm709, %v653, 0
        %v774 = vsel %vm709, %v654, 0
        %v777 = vsel %vm709, %v655, 0
        %v780 = vsel %vm709, %v656, 0
        %v783 = vsel %vm709, %v657, 0
        %v786 = vsel %vm709, %v658, 0
        %v789 = vsel %vm709, %v659, 0
        %v792 = vsel %vm709, %v660, 0
        %v795 = vsel %vm709, %v661, 0
        %v798 = vsel %vm709, %v662, 0
        %v801 = vsel %vm709, %v663, 0
        %v804 = vsel %vm709, %v664, 0
        %v807 = vsel %vm709, %v665, 0
        %v810 = vsel %vm709, %v666, 0
        %v813 = vsel %vm709, %v667, 0
        %v816 = vsel %vm709, %v668, 0
        %v819 = vsel %vm709, %v669, 0
        %v822 = vsel %vm709, %v670, 0
        %v825 = vsel %vm709, %v671, 0
        %v828 = vsel %vm709, %v672, 0
        %v831 = vsel %vm709, %v673, 0
        %v834 = vsel %vm709, %v674, 0
        %v837 = vsel %vm709, %v675, 0
        %v840 = vsel %vm709, %v676, 0
        %v843 = vsel %vm709, %v677, 0
        %v846 = vsel %vm709, %v678, 0
        %v849 = vsel %vm709, %v679, 0
        %v852 = vsel %vm709, %v680, 0
        %v855 = vsel %vm709, %v681, 0
        %v858 = vsel %vm709, %v682, 0
        %v861 = vsel %vm709, %v683, 0
        %v864 = vsel %vm709, %v684, 0
        %v867 = vsel %vm709, %v685, 0
        %v870 = vsel %vm709, %v686, 0
        %v873 = vsel %vm709, %v687, 0
        %v876 = vsel %vm709, %v688, 0
        %v879 = vsel %vm709, %v689, 0
        %v882 = vsel %vm709, %v690, 0
        %v885 = vsel %vm709, %v691, 0
        %v888 = vsel %vm709, %v692, 0
        %v891 = vsel %vm709, %v693, 0
        %v894 = vsel %vm709, %v694, 0
        %v897 = vsel %vm709, %v695, 0
        %v900 = vsel %vm709, %v696, 0
        %902 = vmatprep.subr.bf16.mxu0 0
        %903 = vmatpush1.bf16.msra.mxu0 %v705
        %904 = vmatprep.subr.bf16.mxu0 0
        %905 = vmatpush1.bf16.msra.mxu0 %v706
        %906 = vmatprep.subr.bf16.mxu0 0
        %907 = vmatpush1.bf16.msra.mxu0 0
        %908 = vmatprep.subr.bf16.mxu0 0
        %909 = vmatpush1.bf16.msra.mxu0 0
        %910 = vmatprep.subr.bf16.mxu0 0
        %911 = vmatpush1.bf16.msra.mxu0 0
        %912 = vmatprep.subr.bf16.mxu0 0
        %913 = vmatpush1.bf16.msra.mxu0 0
        %914 = vmatprep.subr.bf16.mxu0 0
        %915 = vmatpush1.bf16.msra.mxu0 0
        %916 = vmatprep.subr.bf16.mxu0 0
        %917 = vmatpush1.bf16.msra.mxu0 0
        %918 = vmatprep.subr.bf16.mxu0 0
        %919 = vmatpush1.bf16.msra.mxu0 0
        %920 = vmatprep.subr.bf16.mxu0 0
        %921 = vmatpush1.bf16.msra.mxu0 0
        %922 = vmatprep.subr.bf16.mxu0 0
        %923 = vmatpush1.bf16.msra.mxu0 0
        %924 = vmatprep.subr.bf16.mxu0 0
        %925 = vmatpush1.bf16.msra.mxu0 0
        %926 = vmatprep.subr.bf16.mxu0 0
        %927 = vmatpush1.bf16.msra.mxu0 0
        %928 = vmatprep.subr.bf16.mxu0 0
        %929 = vmatpush1.bf16.msra.mxu0 0
        %930 = vmatprep.subr.bf16.mxu0 0
        %931 = vmatpush1.bf16.msra.mxu0 0
        %932 = vmatprep.subr.bf16.mxu0 0
        %933 = vmatpush1.bf16.msra.mxu0 0
        %934 = vmatprep.mubr.bf16.mxu0 0
        %935 = vmatmul.mubr.bf16.gmra.mrb[0].mxu0 %v711
        %v936 = vpop.f32.mrb[0].mxu0
        %v937 = vadd.f32 %v375, %v936
        %v938 = vpop.f32.mrb[0].mxu0
        %v939 = vpop.f32.mrb[0].mxu0
        %v940 = vadd.f32 %v375, %v939
        %v941 = vpop.f32.mrb[0].mxu0
        %942 = vmatprep.mubr.bf16.mxu0 0
        %943 = vmatmul.mubr.bf16.gmra.mrb[0].mxu0 %v714
        %v944 = vpop.f32.mrb[0].mxu0
        %v945 = vadd.f32 %v375, %v944
        %v946 = vpop.f32.mrb[0].mxu0
        %v947 = vpop.f32.mrb[0].mxu0
        %v948 = vadd.f32 %v375, %v947
        %v949 = vpop.f32.mrb[0].mxu0
        %950 = vmatprep.mubr.bf16.mxu0 0
        %951 = vmatmul.mubr.bf16.gmra.mrb[0].mxu0 %v717
        %v952 = vpop.f32.mrb[0].mxu0
        %v953 = vadd.f32 %v375, %v952
        %v954 = vpop.f32.mrb[0].mxu0
        %v955 = vpop.f32.mrb[0].mxu0
        %v956 = vadd.f32 %v375, %v955
        %v957 = vpop.f32.mrb[0].mxu0
        %958 = vmatprep.mubr.bf16.mxu0 0
        %959 = vmatmul.mubr.bf16.gmra.mrb[0].mxu0 %v720
        %v960 = vpop.f32.mrb[0].mxu0
        %v961 = vadd.f32 %v375, %v960
        %v962 = vpop.f32.mrb[0].mxu0
        %v963 = vpop.f32.mrb[0].mxu0
        %v964 = vadd.f32 %v375, %v963
        %v965 = vpop.f32.mrb[0].mxu0
        %966 = vmatprep.mubr.bf16.mxu0 0
        %967 = vmatmul.mubr.bf16.gmra.mrb[0].mxu0 %v723
        %v968 = vpop.f32.mrb[0].mxu0
        %v969 = vadd.f32 %v375, %v968
        %v970 = vpop.f32.mrb[0].mxu0
        %v971 = vpop.f32.mrb[0].mxu0
        %v972 = vadd.f32 %v375, %v971
        %v973 = vpop.f32.mrb[0].mxu0
        %974 = vmatprep.mubr.bf16.mxu0 0
        %975 = vmatmul.mubr.bf16.gmra.mrb[0].mxu0 %v726
        %v976 = vpop.f32.mrb[0].mxu0
        %v977 = vadd.f32 %v375, %v976
        %v978 = vpop.f32.mrb[0].mxu0
        %v979 = vpop.f32.mrb[0].mxu0
        %v980 = vadd.f32 %v375, %v979
        %v981 = vpop.f32.mrb[0].mxu0
        %982 = vmatprep.mubr.bf16.mxu0 0
        %983 = vmatmul.mubr.bf16.gmra.mrb[0].mxu0 %v729
        %v984 = vpop.f32.mrb[0].mxu0
        %v985 = vadd.f32 %v375, %v984
        %v986 = vpop.f32.mrb[0].mxu0
        %v987 = vpop.f32.mrb[0].mxu0
        %v988 = vadd.f32 %v375, %v987
        %v989 = vpop.f32.mrb[0].mxu0
        %990 = vmatprep.mubr.bf16.mxu0 0
        %991 = vmatmul.mubr.bf16.gmra.mrb[0].mxu0 %v732
        %v992 = vpop.f32.mrb[0].mxu0
        %v993 = vadd.f32 %v375, %v992
        %v994 = vpop.f32.mrb[0].mxu0
        %v995 = vpop.f32.mrb[0].mxu0
        %v996 = vadd.f32 %v375, %v995
        %v997 = vpop.f32.mrb[0].mxu0
        %998 = vmatprep.mubr.bf16.mxu0 0
        %999 = vmatmul.mubr.bf16.gmra.mrb[0].mxu0 %v735
        %v1000 = vpop.f32.mrb[0].mxu0
        %v1001 = vadd.f32 %v375, %v1000
        %v1002 = vpop.f32.mrb[0].mxu0
        %v1003 = vpop.f32.mrb[0].mxu0
        %v1004 = vadd.f32 %v375, %v1003
        %v1005 = vpop.f32.mrb[0].mxu0
        %1006 = vmatprep.mubr.bf16.mxu0 0
        %1007 = vmatmul.mubr.bf16.gmra.mrb[0].mxu0 %v738
        %v1008 = vpop.f32.mrb[0].mxu0
        %v1009 = vadd.f32 %v375, %v1008
        %v1010 = vpop.f32.mrb[0].mxu0
        %v1011 = vpop.f32.mrb[0].mxu0
        %v1012 = vadd.f32 %v375, %v1011
        %v1013 = vpop.f32.mrb[0].mxu0
        %1014 = vmatprep.mubr.bf16.mxu0 0
        %1015 = vmatmul.mubr.bf16.gmra.mrb[0].mxu0 %v741
        %v1016 = vpop.f32.mrb[0].mxu0
        %v1017 = vadd.f32 %v375, %v1016
        %v1018 = vpop.f32.mrb[0].mxu0
        %v1019 = vpop.f32.mrb[0].mxu0
        %v1020 = vadd.f32 %v375, %v1019
        %v1021 = vpop.f32.mrb[0].mxu0
        %1022 = vmatprep.mubr.bf16.mxu0 0
        %1023 = vmatmul.mubr.bf16.gmra.mrb[0].mxu0 %v744
        %v1024 = vpop.f32.mrb[0].mxu0
        %v1025 = vadd.f32 %v375, %v1024
        %v1026 = vpop.f32.mrb[0].mxu0
        %v1027 = vpop.f32.mrb[0].mxu0
        %v1028 = vadd.f32 %v375, %v1027
        %v1029 = vpop.f32.mrb[0].mxu0
        %1030 = vmatprep.mubr.bf16.mxu0 0
        %1031 = vmatmul.mubr.bf16.gmra.mrb[0].mxu0 %v747
        %v1032 = vpop.f32.mrb[0].mxu0
        %v1033 = vadd.f32 %v375, %v1032
        %v1034 = vpop.f32.mrb[0].mxu0
        %v1035 = vpop.f32.mrb[0].mxu0
        %v1036 = vadd.f32 %v375, %v1035
        %v1037 = vpop.f32.mrb[0].mxu0
        %1038 = vmatprep.mubr.bf16.mxu0 0
        %1039 = vmatmul.mubr.bf16.gmra.mrb[0].mxu0 %v750
        %v1040 = vpop.f32.mrb[0].mxu0
        %v1041 = vadd.f32 %v375, %v1040
        %v1042 = vpop.f32.mrb[0].mxu0
        %v1043 = vpop.f32.mrb[0].mxu0
        %v1044 = vadd.f32 %v375, %v1043
        %v1045 = vpop.f32.mrb[0].mxu0
        %1046 = vmatprep.mubr.bf16.mxu0 0
        %1047 = vmatmul.mubr.bf16.gmra.mrb[0].mxu0 %v753
        %v1048 = vpop.f32.mrb[0].mxu0
        %v1049 = vadd.f32 %v375, %v1048
        %v1050 = vpop.f32.mrb[0].mxu0
        %v1051 = vpop.f32.mrb[0].mxu0
        %v1052 = vadd.f32 %v375, %v1051
        %v1053 = vpop.f32.mrb[0].mxu0
        %1054 = vmatprep.mubr.bf16.mxu0 0
        %1055 = vmatmul.mubr.bf16.gmra.mrb[0].mxu0 %v756
        %v1056 = vpop.f32.mrb[0].mxu0
        %v1057 = vadd.f32 %v375, %v1056
        %v1058 = vpop.f32.mrb[0].mxu0
        %v1059 = vpop.f32.mrb[0].mxu0
        %v1060 = vadd.f32 %v375, %v1059
        %v1061 = vpop.f32.mrb[0].mxu0
        %1062 = vmatprep.mubr.bf16.mxu0 0
        %1063 = vmatmul.mubr.bf16.gmra.mrb[0].mxu0 %v759
        %v1064 = vpop.f32.mrb[0].mxu0
        %v1065 = vadd.f32 %v375, %v1064
        %v1066 = vpop.f32.mrb[0].mxu0
        %v1067 = vpop.f32.mrb[0].mxu0
        %v1068 = vadd.f32 %v375, %v1067
        %v1069 = vpop.f32.mrb[0].mxu0
        %1070 = vmatprep.mubr.bf16.mxu0 0
        %1071 = vmatmul.mubr.bf16.gmra.mrb[0].mxu0 %v762
        %v1072 = vpop.f32.mrb[0].mxu0
        %v1073 = vadd.f32 %v375, %v1072
        %v1074 = vpop.f32.mrb[0].mxu0
        %v1075 = vpop.f32.mrb[0].mxu0
        %v1076 = vadd.f32 %v375, %v1075
        %v1077 = vpop.f32.mrb[0].mxu0
        %1078 = vmatprep.mubr.bf16.mxu0 0
        %1079 = vmatmul.mubr.bf16.gmra.mrb[0].mxu0 %v765
        %v1080 = vpop.f32.mrb[0].mxu0
        %v1081 = vadd.f32 %v375, %v1080
        %v1082 = vpop.f32.mrb[0].mxu0
        %v1083 = vpop.f32.mrb[0].mxu0
        %v1084 = vadd.f32 %v375, %v1083
        %v1085 = vpop.f32.mrb[0].mxu0
        %1086 = vmatprep.mubr.bf16.mxu0 0
        %1087 = vmatmul.mubr.bf16.gmra.mrb[0].mxu0 %v768
        %v1088 = vpop.f32.mrb[0].mxu0
        %v1089 = vadd.f32 %v375, %v1088
        %v1090 = vpop.f32.mrb[0].mxu0
        %v1091 = vpop.f32.mrb[0].mxu0
        %v1092 = vadd.f32 %v375, %v1091
        %v1093 = vpop.f32.mrb[0].mxu0
        %1094 = vmatprep.mubr.bf16.mxu0 0
        %1095 = vmatmul.mubr.bf16.gmra.mrb[0].mxu0 %v771
        %v1096 = vpop.f32.mrb[0].mxu0
        %v1097 = vadd.f32 %v375, %v1096
        %v1098 = vpop.f32.mrb[0].mxu0
        %v1099 = vpop.f32.mrb[0].mxu0
        %v1100 = vadd.f32 %v375, %v1099
        %v1101 = vpop.f32.mrb[0].mxu0
        %1102 = vmatprep.mubr.bf16.mxu0 0
        %1103 = vmatmul.mubr.bf16.gmra.mrb[0].mxu0 %v774
        %v1104 = vpop.f32.mrb[0].mxu0
        %v1105 = vadd.f32 %v375, %v1104
        %v1106 = vpop.f32.mrb[0].mxu0
        %v1107 = vpop.f32.mrb[0].mxu0
        %v1108 = vadd.f32 %v375, %v1107
        %v1109 = vpop.f32.mrb[0].mxu0
        %1110 = vmatprep.mubr.bf16.mxu0 0
        %1111 = vmatmul.mubr.bf16.gmra.mrb[0].mxu0 %v777
        %v1112 = vpop.f32.mrb[0].mxu0
        %v1113 = vadd.f32 %v375, %v1112
        %v1114 = vpop.f32.mrb[0].mxu0
        %v1115 = vpop.f32.mrb[0].mxu0
        %v1116 = vadd.f32 %v375, %v1115
        %v1117 = vpop.f32.mrb[0].mxu0
        %1118 = vmatprep.mubr.bf16.mxu0 0
        %1119 = vmatmul.mubr.bf16.gmra.mrb[0].mxu0 %v780
        %v1120 = vpop.f32.mrb[0].mxu0
        %v1121 = vadd.f32 %v375, %v1120
        %v1122 = vpop.f32.mrb[0].mxu0
        %v1123 = vpop.f32.mrb[0].mxu0
        %v1124 = vadd.f32 %v375, %v1123
        %v1125 = vpop.f32.mrb[0].mxu0
        %1126 = vmatprep.mubr.bf16.mxu0 0
        %1127 = vmatmul.mubr.bf16.gmra.mrb[0].mxu0 %v783
        %v1128 = vpop.f32.mrb[0].mxu0
        %v1129 = vadd.f32 %v375, %v1128
        %v1130 = vpop.f32.mrb[0].mxu0
        %v1131 = vpop.f32.mrb[0].mxu0
        %v1132 = vadd.f32 %v375, %v1131
        %v1133 = vpop.f32.mrb[0].mxu0
        %1134 = vmatprep.mubr.bf16.mxu0 0
        %1135 = vmatmul.mubr.bf16.gmra.mrb[0].mxu0 %v786
        %v1136 = vpop.f32.mrb[0].mxu0
        %v1137 = vadd.f32 %v375, %v1136
        %v1138 = vpop.f32.mrb[0].mxu0
        %v1139 = vpop.f32.mrb[0].mxu0
        %v1140 = vadd.f32 %v375, %v1139
        %v1141 = vpop.f32.mrb[0].mxu0
        %1142 = vmatprep.mubr.bf16.mxu0 0
        %1143 = vmatmul.mubr.bf16.gmra.mrb[0].mxu0 %v789
        %v1144 = vpop.f32.mrb[0].mxu0
        %v1145 = vadd.f32 %v375, %v1144
        %v1146 = vpop.f32.mrb[0].mxu0
        %v1147 = vpop.f32.mrb[0].mxu0
        %v1148 = vadd.f32 %v375, %v1147
        %v1149 = vpop.f32.mrb[0].mxu0
        %1150 = vmatprep.mubr.bf16.mxu0 0
        %1151 = vmatmul.mubr.bf16.gmra.mrb[0].mxu0 %v792
        %v1152 = vpop.f32.mrb[0].mxu0
        %v1153 = vadd.f32 %v375, %v1152
        %v1154 = vpop.f32.mrb[0].mxu0
        %v1155 = vpop.f32.mrb[0].mxu0
        %v1156 = vadd.f32 %v375, %v1155
        %v1157 = vpop.f32.mrb[0].mxu0
        %1158 = vmatprep.mubr.bf16.mxu0 0
        %1159 = vmatmul.mubr.bf16.gmra.mrb[0].mxu0 %v795
        %v1160 = vpop.f32.mrb[0].mxu0
        %v1161 = vadd.f32 %v375, %v1160
        %v1162 = vpop.f32.mrb[0].mxu0
        %v1163 = vpop.f32.mrb[0].mxu0
        %v1164 = vadd.f32 %v375, %v1163
        %v1165 = vpop.f32.mrb[0].mxu0
        %1166 = vmatprep.mubr.bf16.mxu0 0
        %1167 = vmatmul.mubr.bf16.gmra.mrb[0].mxu0 %v798
        %v1168 = vpop.f32.mrb[0].mxu0
        %v1169 = vadd.f32 %v375, %v1168
        %v1170 = vpop.f32.mrb[0].mxu0
        %v1171 = vpop.f32.mrb[0].mxu0
        %v1172 = vadd.f32 %v375, %v1171
        %v1173 = vpop.f32.mrb[0].mxu0
        %1174 = vmatprep.mubr.bf16.mxu0 0
        %1175 = vmatmul.mubr.bf16.gmra.mrb[0].mxu0 %v801
        %v1176 = vpop.f32.mrb[0].mxu0
        %v1177 = vadd.f32 %v375, %v1176
        %v1178 = vpop.f32.mrb[0].mxu0
        %v1179 = vpop.f32.mrb[0].mxu0
        %v1180 = vadd.f32 %v375, %v1179
        %v1181 = vpop.f32.mrb[0].mxu0
        %1182 = vmatprep.mubr.bf16.mxu0 0
        %1183 = vmatmul.mubr.bf16.gmra.mrb[0].mxu0 %v804
        %v1184 = vpop.f32.mrb[0].mxu0
        %v1185 = vadd.f32 %v375, %v1184
        %v1186 = vpop.f32.mrb[0].mxu0
        %v1187 = vpop.f32.mrb[0].mxu0
        %v1188 = vadd.f32 %v375, %v1187
        %v1189 = vpop.f32.mrb[0].mxu0
        %1190 = vmatprep.mubr.bf16.mxu0 0
        %1191 = vmatmul.mubr.bf16.gmra.mrb[0].mxu0 %v807
        %v1192 = vpop.f32.mrb[0].mxu0
        %v1193 = vadd.f32 %v375, %v1192
        %v1194 = vpop.f32.mrb[0].mxu0
        %v1195 = vpop.f32.mrb[0].mxu0
        %v1196 = vadd.f32 %v375, %v1195
        %v1197 = vpop.f32.mrb[0].mxu0
        %1198 = vmatprep.mubr.bf16.mxu0 0
        %1199 = vmatmul.mubr.bf16.gmra.mrb[0].mxu0 %v810
        %v1200 = vpop.f32.mrb[0].mxu0
        %v1201 = vadd.f32 %v375, %v1200
        %v1202 = vpop.f32.mrb[0].mxu0
        %v1203 = vpop.f32.mrb[0].mxu0
        %v1204 = vadd.f32 %v375, %v1203
        %v1205 = vpop.f32.mrb[0].mxu0
        %1206 = vmatprep.mubr.bf16.mxu0 0
        %1207 = vmatmul.mubr.bf16.gmra.mrb[0].mxu0 %v813
        %v1208 = vpop.f32.mrb[0].mxu0
        %v1209 = vadd.f32 %v375, %v1208
        %v1210 = vpop.f32.mrb[0].mxu0
        %v1211 = vpop.f32.mrb[0].mxu0
        %v1212 = vadd.f32 %v375, %v1211
        %v1213 = vpop.f32.mrb[0].mxu0
        %1214 = vmatprep.mubr.bf16.mxu0 0
        %1215 = vmatmul.mubr.bf16.gmra.mrb[0].mxu0 %v816
        %v1216 = vpop.f32.mrb[0].mxu0
        %v1217 = vadd.f32 %v375, %v1216
        %v1218 = vpop.f32.mrb[0].mxu0
        %v1219 = vpop.f32.mrb[0].mxu0
        %v1220 = vadd.f32 %v375, %v1219
        %v1221 = vpop.f32.mrb[0].mxu0
        %1222 = vmatprep.mubr.bf16.mxu0 0
        %1223 = vmatmul.mubr.bf16.gmra.mrb[0].mxu0 %v819
        %v1224 = vpop.f32.mrb[0].mxu0
        %v1225 = vadd.f32 %v375, %v1224
        %v1226 = vpop.f32.mrb[0].mxu0
        %v1227 = vpop.f32.mrb[0].mxu0
        %v1228 = vadd.f32 %v375, %v1227
        %v1229 = vpop.f32.mrb[0].mxu0
        %1230 = vmatprep.mubr.bf16.mxu0 0
        %1231 = vmatmul.mubr.bf16.gmra.mrb[0].mxu0 %v822
        %v1232 = vpop.f32.mrb[0].mxu0
        %v1233 = vadd.f32 %v375, %v1232
        %v1234 = vpop.f32.mrb[0].mxu0
        %v1235 = vpop.f32.mrb[0].mxu0
        %v1236 = vadd.f32 %v375, %v1235
        %v1237 = vpop.f32.mrb[0].mxu0
        %1238 = vmatprep.mubr.bf16.mxu0 0
        %1239 = vmatmul.mubr.bf16.gmra.mrb[0].mxu0 %v825
        %v1240 = vpop.f32.mrb[0].mxu0
        %v1241 = vadd.f32 %v375, %v1240
        %v1242 = vpop.f32.mrb[0].mxu0
        %v1243 = vpop.f32.mrb[0].mxu0
        %v1244 = vadd.f32 %v375, %v1243
        %v1245 = vpop.f32.mrb[0].mxu0
        %1246 = vmatprep.mubr.bf16.mxu0 0
        %1247 = vmatmul.mubr.bf16.gmra.mrb[0].mxu0 %v828
        %v1248 = vpop.f32.mrb[0].mxu0
        %v1249 = vadd.f32 %v375, %v1248
        %v1250 = vpop.f32.mrb[0].mxu0
        %v1251 = vpop.f32.mrb[0].mxu0
        %v1252 = vadd.f32 %v375, %v1251
        %v1253 = vpop.f32.mrb[0].mxu0
        %1254 = vmatprep.mubr.bf16.mxu0 0
        %1255 = vmatmul.mubr.bf16.gmra.mrb[0].mxu0 %v831
        %v1256 = vpop.f32.mrb[0].mxu0
        %v1257 = vadd.f32 %v375, %v1256
        %v1258 = vpop.f32.mrb[0].mxu0
        %v1259 = vpop.f32.mrb[0].mxu0
        %v1260 = vadd.f32 %v375, %v1259
        %v1261 = vpop.f32.mrb[0].mxu0
        %1262 = vmatprep.mubr.bf16.mxu0 0
        %1263 = vmatmul.mubr.bf16.gmra.mrb[0].mxu0 %v834
        %v1264 = vpop.f32.mrb[0].mxu0
        %v1265 = vadd.f32 %v375, %v1264
        %v1266 = vpop.f32.mrb[0].mxu0
        %v1267 = vpop.f32.mrb[0].mxu0
        %v1268 = vadd.f32 %v375, %v1267
        %v1269 = vpop.f32.mrb[0].mxu0
        %1270 = vmatprep.mubr.bf16.mxu0 0
        %1271 = vmatmul.mubr.bf16.gmra.mrb[0].mxu0 %v837
        %v1272 = vpop.f32.mrb[0].mxu0
        %v1273 = vadd.f32 %v375, %v1272
        %v1274 = vpop.f32.mrb[0].mxu0
        %v1275 = vpop.f32.mrb[0].mxu0
        %v1276 = vadd.f32 %v375, %v1275
        %v1277 = vpop.f32.mrb[0].mxu0
        %1278 = vmatprep.mubr.bf16.mxu0 0
        %1279 = vmatmul.mubr.bf16.gmra.mrb[0].mxu0 %v840
        %v1280 = vpop.f32.mrb[0].mxu0
        %v1281 = vadd.f32 %v375, %v1280
        %v1282 = vpop.f32.mrb[0].mxu0
        %v1283 = vpop.f32.mrb[0].mxu0
        %v1284 = vadd.f32 %v375, %v1283
        %v1285 = vpop.f32.mrb[0].mxu0
        %1286 = vmatprep.mubr.bf16.mxu0 0
        %1287 = vmatmul.mubr.bf16.gmra.mrb[0].mxu0 %v843
        %v1288 = vpop.f32.mrb[0].mxu0
        %v1289 = vadd.f32 %v375, %v1288
        %v1290 = vpop.f32.mrb[0].mxu0
        %v1291 = vpop.f32.mrb[0].mxu0
        %v1292 = vadd.f32 %v375, %v1291
        %v1293 = vpop.f32.mrb[0].mxu0
        %1294 = vmatprep.mubr.bf16.mxu0 0
        %1295 = vmatmul.mubr.bf16.gmra.mrb[0].mxu0 %v846
        %v1296 = vpop.f32.mrb[0].mxu0
        %v1297 = vadd.f32 %v375, %v1296
        %v1298 = vpop.f32.mrb[0].mxu0
        %v1299 = vpop.f32.mrb[0].mxu0
        %v1300 = vadd.f32 %v375, %v1299
        %v1301 = vpop.f32.mrb[0].mxu0
        %1302 = vmatprep.mubr.bf16.mxu0 0
        %1303 = vmatmul.mubr.bf16.gmra.mrb[0].mxu0 %v849
        %v1304 = vpop.f32.mrb[0].mxu0
        %v1305 = vadd.f32 %v375, %v1304
        %v1306 = vpop.f32.mrb[0].mxu0
        %v1307 = vpop.f32.mrb[0].mxu0
        %v1308 = vadd.f32 %v375, %v1307
        %v1309 = vpop.f32.mrb[0].mxu0
        %1310 = vmatprep.mubr.bf16.mxu0 0
        %1311 = vmatmul.mubr.bf16.gmra.mrb[0].mxu0 %v852
        %v1312 = vpop.f32.mrb[0].mxu0
        %v1313 = vadd.f32 %v375, %v1312
        %v1314 = vpop.f32.mrb[0].mxu0
        %v1315 = vpop.f32.mrb[0].mxu0
        %v1316 = vadd.f32 %v375, %v1315
        %v1317 = vpop.f32.mrb[0].mxu0
        %1318 = vmatprep.mubr.bf16.mxu0 0
        %1319 = vmatmul.mubr.bf16.gmra.mrb[0].mxu0 %v855
        %v1320 = vpop.f32.mrb[0].mxu0
        %v1321 = vadd.f32 %v375, %v1320
        %v1322 = vpop.f32.mrb[0].mxu0
        %v1323 = vpop.f32.mrb[0].mxu0
        %v1324 = vadd.f32 %v375, %v1323
        %v1325 = vpop.f32.mrb[0].mxu0
        %1326 = vmatprep.mubr.bf16.mxu0 0
        %1327 = vmatmul.mubr.bf16.gmra.mrb[0].mxu0 %v858
        %v1328 = vpop.f32.mrb[0].mxu0
        %v1329 = vadd.f32 %v375, %v1328
        %v1330 = vpop.f32.mrb[0].mxu0
        %v1331 = vpop.f32.mrb[0].mxu0
        %v1332 = vadd.f32 %v375, %v1331
        %v1333 = vpop.f32.mrb[0].mxu0
        %1334 = vmatprep.mubr.bf16.mxu0 0
        %1335 = vmatmul.mubr.bf16.gmra.mrb[0].mxu0 %v861
        %v1336 = vpop.f32.mrb[0].mxu0
        %v1337 = vadd.f32 %v375, %v1336
        %v1338 = vpop.f32.mrb[0].mxu0
        %v1339 = vpop.f32.mrb[0].mxu0
        %v1340 = vadd.f32 %v375, %v1339
        %v1341 = vpop.f32.mrb[0].mxu0
        %1342 = vmatprep.mubr.bf16.mxu0 0
        %1343 = vmatmul.mubr.bf16.gmra.mrb[0].mxu0 %v864
        %v1344 = vpop.f32.mrb[0].mxu0
        %v1345 = vadd.f32 %v375, %v1344
        %v1346 = vpop.f32.mrb[0].mxu0
        %v1347 = vpop.f32.mrb[0].mxu0
        %v1348 = vadd.f32 %v375, %v1347
        %v1349 = vpop.f32.mrb[0].mxu0
        %1350 = vmatprep.mubr.bf16.mxu0 0
        %1351 = vmatmul.mubr.bf16.gmra.mrb[0].mxu0 %v867
        %v1352 = vpop.f32.mrb[0].mxu0
        %v1353 = vadd.f32 %v375, %v1352
        %v1354 = vpop.f32.mrb[0].mxu0
        %v1355 = vpop.f32.mrb[0].mxu0
        %v1356 = vadd.f32 %v375, %v1355
        %v1357 = vpop.f32.mrb[0].mxu0
        %1358 = vmatprep.mubr.bf16.mxu0 0
        %1359 = vmatmul.mubr.bf16.gmra.mrb[0].mxu0 %v870
        %v1360 = vpop.f32.mrb[0].mxu0
        %v1361 = vadd.f32 %v375, %v1360
        %v1362 = vpop.f32.mrb[0].mxu0
        %v1363 = vpop.f32.mrb[0].mxu0
        %v1364 = vadd.f32 %v375, %v1363
        %v1365 = vpop.f32.mrb[0].mxu0
        %1366 = vmatprep.mubr.bf16.mxu0 0
        %1367 = vmatmul.mubr.bf16.gmra.mrb[0].mxu0 %v873
        %v1368 = vpop.f32.mrb[0].mxu0
        %v1369 = vadd.f32 %v375, %v1368
        %v1370 = vpop.f32.mrb[0].mxu0
        %v1371 = vpop.f32.mrb[0].mxu0
        %v1372 = vadd.f32 %v375, %v1371
        %v1373 = vpop.f32.mrb[0].mxu0
        %1374 = vmatprep.mubr.bf16.mxu0 0
        %1375 = vmatmul.mubr.bf16.gmra.mrb[0].mxu0 %v876
        %v1376 = vpop.f32.mrb[0].mxu0
        %v1377 = vadd.f32 %v375, %v1376
        %v1378 = vpop.f32.mrb[0].mxu0
        %v1379 = vpop.f32.mrb[0].mxu0
        %v1380 = vadd.f32 %v375, %v1379
        %v1381 = vpop.f32.mrb[0].mxu0
        %1382 = vmatprep.mubr.bf16.mxu0 0
        %1383 = vmatmul.mubr.bf16.gmra.mrb[0].mxu0 %v879
        %v1384 = vpop.f32.mrb[0].mxu0
        %v1385 = vadd.f32 %v375, %v1384
        %v1386 = vpop.f32.mrb[0].mxu0
        %v1387 = vpop.f32.mrb[0].mxu0
        %v1388 = vadd.f32 %v375, %v1387
        %v1389 = vpop.f32.mrb[0].mxu0
        %1390 = vmatprep.mubr.bf16.mxu0 0
        %1391 = vmatmul.mubr.bf16.gmra.mrb[0].mxu0 %v882
        %v1392 = vpop.f32.mrb[0].mxu0
        %v1393 = vadd.f32 %v375, %v1392
        %v1394 = vpop.f32.mrb[0].mxu0
        %v1395 = vpop.f32.mrb[0].mxu0
        %v1396 = vadd.f32 %v375, %v1395
        %v1397 = vpop.f32.mrb[0].mxu0
        %1398 = vmatprep.mubr.bf16.mxu0 0
        %1399 = vmatmul.mubr.bf16.gmra.mrb[0].mxu0 %v885
        %v1400 = vpop.f32.mrb[0].mxu0
        %v1401 = vadd.f32 %v375, %v1400
        %v1402 = vpop.f32.mrb[0].mxu0
        %v1403 = vpop.f32.mrb[0].mxu0
        %v1404 = vadd.f32 %v375, %v1403
        %v1405 = vpop.f32.mrb[0].mxu0
        %1406 = vmatprep.mubr.bf16.mxu0 0
        %1407 = vmatmul.mubr.bf16.gmra.mrb[0].mxu0 %v888
        %v1408 = vpop.f32.mrb[0].mxu0
        %v1409 = vadd.f32 %v375, %v1408
        %v1410 = vpop.f32.mrb[0].mxu0
        %v1411 = vpop.f32.mrb[0].mxu0
        %v1412 = vadd.f32 %v375, %v1411
        %v1413 = vpop.f32.mrb[0].mxu0
        %1414 = vmatprep.mubr.bf16.mxu0 0
        %1415 = vmatmul.mubr.bf16.gmra.mrb[0].mxu0 %v891
        %v1416 = vpop.f32.mrb[0].mxu0
        %v1417 = vadd.f32 %v375, %v1416
        %v1418 = vpop.f32.mrb[0].mxu0
        %v1419 = vpop.f32.mrb[0].mxu0
        %v1420 = vadd.f32 %v375, %v1419
        %v1421 = vpop.f32.mrb[0].mxu0
        %1422 = vmatprep.mubr.bf16.mxu0 0
        %1423 = vmatmul.mubr.bf16.gmra.mrb[0].mxu0 %v894
        %v1424 = vpop.f32.mrb[0].mxu0
        %v1425 = vadd.f32 %v375, %v1424
        %v1426 = vpop.f32.mrb[0].mxu0
        %v1427 = vpop.f32.mrb[0].mxu0
        %v1428 = vadd.f32 %v375, %v1427
        %v1429 = vpop.f32.mrb[0].mxu0
        %1430 = vmatprep.mubr.bf16.mxu0 0
        %1431 = vmatmul.mubr.bf16.gmra.mrb[0].mxu0 %v897
        %v1432 = vpop.f32.mrb[0].mxu0
        %v1433 = vadd.f32 %v375, %v1432
        %v1434 = vpop.f32.mrb[0].mxu0
        %v1435 = vpop.f32.mrb[0].mxu0
        %v1436 = vadd.f32 %v375, %v1435
        %v1437 = vpop.f32.mrb[0].mxu0
        %1438 = vmatprep.mubr.bf16.mxu0 0
        %1439 = vmatmul.mubr.bf16.gmra.mrb[0].mxu0 %v900
        %v1440 = vpop.f32.mrb[0].mxu0
        %v1441 = vadd.f32 %v375, %v1440
        %v1442 = vpop.f32.mrb[0].mxu0
        %v1443 = vpop.f32.mrb[0].mxu0
        %v1444 = vadd.f32 %v375, %v1443
        %v1445 = vpop.f32.mrb[0].mxu0
        %1446 = vdwg.mxu0
        %v1447 = vmax.f32 %v937, 0.0
        %v1448 = vmax.f32 %v940, 0.0
        %v1449 = vmax.f32 %v945, 0.0
        %v1450 = vmax.f32 %v948, 0.0
        %v1451 = vmax.f32 %v953, 0.0
        %v1452 = vmax.f32 %v956, 0.0
        %v1453 = vmax.f32 %v961, 0.0
        %v1454 = vmax.f32 %v964, 0.0
        %v1455 = vmax.f32 %v969, 0.0
        %v1456 = vmax.f32 %v972, 0.0
        %v1457 = vmax.f32 %v977, 0.0
        %v1458 = vmax.f32 %v980, 0.0
        %v1459 = vmax.f32 %v985, 0.0
        %v1460 = vmax.f32 %v988, 0.0
        %v1461 = vmax.f32 %v993, 0.0
        %v1462 = vmax.f32 %v996, 0.0
        %v1463 = vmax.f32 %v1001, 0.0
        %v1464 = vmax.f32 %v1004, 0.0
        %v1465 = vmax.f32 %v1009, 0.0
        %v1466 = vmax.f32 %v1012, 0.0
        %v1467 = vmax.f32 %v1017, 0.0
        %v1468 = vmax.f32 %v1020, 0.0
        %v1469 = vmax.f32 %v1025, 0.0
        %v1470 = vmax.f32 %v1028, 0.0
        %v1471 = vmax.f32 %v1033, 0.0
        %v1472 = vmax.f32 %v1036, 0.0
        %v1473 = vmax.f32 %v1041, 0.0
        %v1474 = vmax.f32 %v1044, 0.0
        %v1475 = vmax.f32 %v1049, 0.0
        %v1476 = vmax.f32 %v1052, 0.0
        %v1477 = vmax.f32 %v1057, 0.0
        %v1478 = vmax.f32 %v1060, 0.0
        %v1479 = vmax.f32 %v1065, 0.0
        %v1480 = vmax.f32 %v1068, 0.0
        %v1481 = vmax.f32 %v1073, 0.0
        %v1482 = vmax.f32 %v1076, 0.0
        %v1483 = vmax.f32 %v1081, 0.0
        %v1484 = vmax.f32 %v1084, 0.0
        %v1485 = vmax.f32 %v1089, 0.0
        %v1486 = vmax.f32 %v1092, 0.0
        %v1487 = vmax.f32 %v1097, 0.0
        %v1488 = vmax.f32 %v1100, 0.0
        %v1489 = vmax.f32 %v1105, 0.0
        %v1490 = vmax.f32 %v1108, 0.0
        %v1491 = vmax.f32 %v1113, 0.0
        %v1492 = vmax.f32 %v1116, 0.0
        %v1493 = vmax.f32 %v1121, 0.0
        %v1494 = vmax.f32 %v1124, 0.0
        %v1495 = vmax.f32 %v1129, 0.0
        %v1496 = vmax.f32 %v1132, 0.0
        %v1497 = vmax.f32 %v1137, 0.0
        %v1498 = vmax.f32 %v1140, 0.0
        %v1499 = vmax.f32 %v1145, 0.0
        %v1500 = vmax.f32 %v1148, 0.0
        %v1501 = vmax.f32 %v1153, 0.0
        %v1502 = vmax.f32 %v1156, 0.0
        %v1503 = vmax.f32 %v1161, 0.0
        %v1504 = vmax.f32 %v1164, 0.0
        %v1505 = vmax.f32 %v1169, 0.0
        %v1506 = vmax.f32 %v1172, 0.0
        %v1507 = vmax.f32 %v1177, 0.0
        %v1508 = vmax.f32 %v1180, 0.0
        %v1509 = vmax.f32 %v1185, 0.0
        %v1510 = vmax.f32 %v1188, 0.0
        %v1511 = vmax.f32 %v1193, 0.0
        %v1512 = vmax.f32 %v1196, 0.0
        %v1513 = vmax.f32 %v1201, 0.0
        %v1514 = vmax.f32 %v1204, 0.0
        %v1515 = vmax.f32 %v1209, 0.0
        %v1516 = vmax.f32 %v1212, 0.0
        %v1517 = vmax.f32 %v1217, 0.0
        %v1518 = vmax.f32 %v1220, 0.0
        %v1519 = vmax.f32 %v1225, 0.0
        %v1520 = vmax.f32 %v1228, 0.0
        %v1521 = vmax.f32 %v1233, 0.0
        %v1522 = vmax.f32 %v1236, 0.0
        %v1523 = vmax.f32 %v1241, 0.0
        %v1524 = vmax.f32 %v1244, 0.0
        %v1525 = vmax.f32 %v1249, 0.0
        %v1526 = vmax.f32 %v1252, 0.0
        %v1527 = vmax.f32 %v1257, 0.0
        %v1528 = vmax.f32 %v1260, 0.0
        %v1529 = vmax.f32 %v1265, 0.0
        %v1530 = vmax.f32 %v1268, 0.0
        %v1531 = vmax.f32 %v1273, 0.0
        %v1532 = vmax.f32 %v1276, 0.0
        %v1533 = vmax.f32 %v1281, 0.0
        %v1534 = vmax.f32 %v1284, 0.0
        %v1535 = vmax.f32 %v1289, 0.0
        %v1536 = vmax.f32 %v1292, 0.0
        %v1537 = vmax.f32 %v1297, 0.0
        %v1538 = vmax.f32 %v1300, 0.0
        %v1539 = vmax.f32 %v1305, 0.0
        %v1540 = vmax.f32 %v1308, 0.0
        %v1541 = vmax.f32 %v1313, 0.0
        %v1542 = vmax.f32 %v1316, 0.0
        %v1543 = vmax.f32 %v1321, 0.0
        %v1544 = vmax.f32 %v1324, 0.0
        %v1545 = vmax.f32 %v1329, 0.0
        %v1546 = vmax.f32 %v1332, 0.0
        %v1547 = vmax.f32 %v1337, 0.0
        %v1548 = vmax.f32 %v1340, 0.0
        %v1549 = vmax.f32 %v1345, 0.0
        %v1550 = vmax.f32 %v1348, 0.0
        %v1551 = vmax.f32 %v1353, 0.0
        %v1552 = vmax.f32 %v1356, 0.0
        %v1553 = vmax.f32 %v1361, 0.0
        %v1554 = vmax.f32 %v1364, 0.0
        %v1555 = vmax.f32 %v1369, 0.0
        %v1556 = vmax.f32 %v1372, 0.0
        %v1557 = vmax.f32 %v1377, 0.0
        %v1558 = vmax.f32 %v1380, 0.0
        %v1559 = vmax.f32 %v1385, 0.0
        %v1560 = vmax.f32 %v1388, 0.0
        %v1561 = vmax.f32 %v1393, 0.0
        %v1562 = vmax.f32 %v1396, 0.0
        %v1563 = vmax.f32 %v1401, 0.0
        %v1564 = vmax.f32 %v1404, 0.0
        %v1565 = vmax.f32 %v1409, 0.0
        %v1566 = vmax.f32 %v1412, 0.0
        %v1567 = vmax.f32 %v1417, 0.0
        %v1568 = vmax.f32 %v1420, 0.0
        %v1569 = vmax.f32 %v1425, 0.0
        %v1570 = vmax.f32 %v1428, 0.0
        %v1571 = vmax.f32 %v1433, 0.0
        %v1572 = vmax.f32 %v1436, 0.0
        %v1573 = vmax.f32 %v1441, 0.0
        %v1574 = vmax.f32 %v1444, 0.0
        %v1575 = vpack.c.bf16 %v1448, %v1447
        %v1576 = vpack.c.bf16 %v1450, %v1449
        %v1577 = vpack.c.bf16 %v1452, %v1451
        %v1578 = vpack.c.bf16 %v1454, %v1453
        %v1579 = vpack.c.bf16 %v1456, %v1455
        %v1580 = vpack.c.bf16 %v1458, %v1457
        %v1581 = vpack.c.bf16 %v1460, %v1459
        %v1582 = vpack.c.bf16 %v1462, %v1461
        %v1583 = vpack.c.bf16 %v1464, %v1463
        %v1584 = vpack.c.bf16 %v1466, %v1465
        %v1585 = vpack.c.bf16 %v1468, %v1467
        %v1586 = vpack.c.bf16 %v1470, %v1469
        %v1587 = vpack.c.bf16 %v1472, %v1471
        %v1588 = vpack.c.bf16 %v1474, %v1473
        %v1589 = vpack.c.bf16 %v1476, %v1475
        %v1590 = vpack.c.bf16 %v1478, %v1477
        %v1591 = vpack.c.bf16 %v1480, %v1479
        %v1592 = vpack.c.bf16 %v1482, %v1481
        %v1593 = vpack.c.bf16 %v1484, %v1483
        %v1594 = vpack.c.bf16 %v1486, %v1485
        %v1595 = vpack.c.bf16 %v1488, %v1487
        %v1596 = vpack.c.bf16 %v1490, %v1489
        %v1597 = vpack.c.bf16 %v1492, %v1491
        %v1598 = vpack.c.bf16 %v1494, %v1493
        %v1599 = vpack.c.bf16 %v1496, %v1495
        %v1600 = vpack.c.bf16 %v1498, %v1497
        %v1601 = vpack.c.bf16 %v1500, %v1499
        %v1602 = vpack.c.bf16 %v1502, %v1501
        %v1603 = vpack.c.bf16 %v1504, %v1503
        %v1604 = vpack.c.bf16 %v1506, %v1505
        %v1605 = vpack.c.bf16 %v1508, %v1507
        %v1606 = vpack.c.bf16 %v1510, %v1509
        %v1607 = vpack.c.bf16 %v1512, %v1511
        %v1608 = vpack.c.bf16 %v1514, %v1513
        %v1609 = vpack.c.bf16 %v1516, %v1515
        %v1610 = vpack.c.bf16 %v1518, %v1517
        %v1611 = vpack.c.bf16 %v1520, %v1519
        %v1612 = vpack.c.bf16 %v1522, %v1521
        %v1613 = vpack.c.bf16 %v1524, %v1523
        %v1614 = vpack.c.bf16 %v1526, %v1525
        %v1615 = vpack.c.bf16 %v1528, %v1527
        %v1616 = vpack.c.bf16 %v1530, %v1529
        %v1617 = vpack.c.bf16 %v1532, %v1531
        %v1618 = vpack.c.bf16 %v1534, %v1533
        %v1619 = vpack.c.bf16 %v1536, %v1535
        %v1620 = vpack.c.bf16 %v1538, %v1537
        %v1621 = vpack.c.bf16 %v1540, %v1539
        %v1622 = vpack.c.bf16 %v1542, %v1541
        %v1623 = vpack.c.bf16 %v1544, %v1543
        %v1624 = vpack.c.bf16 %v1546, %v1545
        %v1625 = vpack.c.bf16 %v1548, %v1547
        %v1626 = vpack.c.bf16 %v1550, %v1549
        %v1627 = vpack.c.bf16 %v1552, %v1551
        %v1628 = vpack.c.bf16 %v1554, %v1553
        %v1629 = vpack.c.bf16 %v1556, %v1555
        %v1630 = vpack.c.bf16 %v1558, %v1557
        %v1631 = vpack.c.bf16 %v1560, %v1559
        %v1632 = vpack.c.bf16 %v1562, %v1561
        %v1633 = vpack.c.bf16 %v1564, %v1563
        %v1634 = vpack.c.bf16 %v1566, %v1565
        %v1635 = vpack.c.bf16 %v1568, %v1567
        %v1636 = vpack.c.bf16 %v1570, %v1569
        %v1637 = vpack.c.bf16 %v1572, %v1571
        %v1638 = vpack.c.bf16 %v1574, %v1573
        %v1703 = vunpack.c.l.b16 %v1575
        %v1704 = vunpack.c.h.b16 %v1575
        %v1705 = vunpack.c.l.b16 %v1576
        %v1706 = vunpack.c.h.b16 %v1576
        %v1707 = vunpack.c.l.b16 %v1577
        %v1708 = vunpack.c.h.b16 %v1577
        %v1709 = vunpack.c.l.b16 %v1578
        %v1710 = vunpack.c.h.b16 %v1578
        %v1711 = vunpack.c.l.b16 %v1579
        %v1712 = vunpack.c.h.b16 %v1579
        %v1713 = vunpack.c.l.b16 %v1580
        %v1714 = vunpack.c.h.b16 %v1580
        %v1715 = vunpack.c.l.b16 %v1581
        %v1716 = vunpack.c.h.b16 %v1581
        %v1717 = vunpack.c.l.b16 %v1582
        %v1718 = vunpack.c.h.b16 %v1582
        %v1719 = vunpack.c.l.b16 %v1583
        %v1720 = vunpack.c.h.b16 %v1583
        %v1721 = vunpack.c.l.b16 %v1584
        %v1722 = vunpack.c.h.b16 %v1584
        %v1723 = vunpack.c.l.b16 %v1585
        %v1724 = vunpack.c.h.b16 %v1585
        %v1725 = vunpack.c.l.b16 %v1586
        %v1726 = vunpack.c.h.b16 %v1586
        %v1727 = vunpack.c.l.b16 %v1587
        %v1728 = vunpack.c.h.b16 %v1587
        %v1729 = vunpack.c.l.b16 %v1588
        %v1730 = vunpack.c.h.b16 %v1588
        %v1731 = vunpack.c.l.b16 %v1589
        %v1732 = vunpack.c.h.b16 %v1589
        %v1733 = vunpack.c.l.b16 %v1590
        %v1734 = vunpack.c.h.b16 %v1590
        %v1735 = vunpack.c.l.b16 %v1591
        %v1736 = vunpack.c.h.b16 %v1591
        %v1737 = vunpack.c.l.b16 %v1592
        %v1738 = vunpack.c.h.b16 %v1592
        %v1739 = vunpack.c.l.b16 %v1593
        %v1740 = vunpack.c.h.b16 %v1593
        %v1741 = vunpack.c.l.b16 %v1594
        %v1742 = vunpack.c.h.b16 %v1594
        %v1743 = vunpack.c.l.b16 %v1595
        %v1744 = vunpack.c.h.b16 %v1595
        %v1745 = vunpack.c.l.b16 %v1596
        %v1746 = vunpack.c.h.b16 %v1596
        %v1747 = vunpack.c.l.b16 %v1597
        %v1748 = vunpack.c.h.b16 %v1597
        %v1749 = vunpack.c.l.b16 %v1598
        %v1750 = vunpack.c.h.b16 %v1598
        %v1751 = vunpack.c.l.b16 %v1599
        %v1752 = vunpack.c.h.b16 %v1599
        %v1753 = vunpack.c.l.b16 %v1600
        %v1754 = vunpack.c.h.b16 %v1600
        %v1755 = vunpack.c.l.b16 %v1601
        %v1756 = vunpack.c.h.b16 %v1601
        %v1757 = vunpack.c.l.b16 %v1602
        %v1758 = vunpack.c.h.b16 %v1602
        %v1759 = vunpack.c.l.b16 %v1603
        %v1760 = vunpack.c.h.b16 %v1603
        %v1761 = vunpack.c.l.b16 %v1604
        %v1762 = vunpack.c.h.b16 %v1604
        %v1763 = vunpack.c.l.b16 %v1605
        %v1764 = vunpack.c.h.b16 %v1605
        %v1765 = vunpack.c.l.b16 %v1606
        %v1766 = vunpack.c.h.b16 %v1606
        %v1767 = vunpack.c.l.b16 %v1607
        %v1768 = vunpack.c.h.b16 %v1607
        %v1769 = vunpack.c.l.b16 %v1608
        %v1770 = vunpack.c.h.b16 %v1608
        %v1771 = vunpack.c.l.b16 %v1609
        %v1772 = vunpack.c.h.b16 %v1609
        %v1773 = vunpack.c.l.b16 %v1610
        %v1774 = vunpack.c.h.b16 %v1610
        %v1775 = vunpack.c.l.b16 %v1611
        %v1776 = vunpack.c.h.b16 %v1611
        %v1777 = vunpack.c.l.b16 %v1612
        %v1778 = vunpack.c.h.b16 %v1612
        %v1779 = vunpack.c.l.b16 %v1613
        %v1780 = vunpack.c.h.b16 %v1613
        %v1781 = vunpack.c.l.b16 %v1614
        %v1782 = vunpack.c.h.b16 %v1614
        %v1783 = vunpack.c.l.b16 %v1615
        %v1784 = vunpack.c.h.b16 %v1615
        %v1785 = vunpack.c.l.b16 %v1616
        %v1786 = vunpack.c.h.b16 %v1616
        %v1787 = vunpack.c.l.b16 %v1617
        %v1788 = vunpack.c.h.b16 %v1617
        %v1789 = vunpack.c.l.b16 %v1618
        %v1790 = vunpack.c.h.b16 %v1618
        %v1791 = vunpack.c.l.b16 %v1619
        %v1792 = vunpack.c.h.b16 %v1619
        %v1793 = vunpack.c.l.b16 %v1620
        %v1794 = vunpack.c.h.b16 %v1620
        %v1795 = vunpack.c.l.b16 %v1621
        %v1796 = vunpack.c.h.b16 %v1621
        %v1797 = vunpack.c.l.b16 %v1622
        %v1798 = vunpack.c.h.b16 %v1622
        %v1799 = vunpack.c.l.b16 %v1623
        %v1800 = vunpack.c.h.b16 %v1623
        %v1801 = vunpack.c.l.b16 %v1624
        %v1802 = vunpack.c.h.b16 %v1624
        %v1803 = vunpack.c.l.b16 %v1625
        %v1804 = vunpack.c.h.b16 %v1625
        %v1805 = vunpack.c.l.b16 %v1626
        %v1806 = vunpack.c.h.b16 %v1626
        %v1807 = vunpack.c.l.b16 %v1627
        %v1808 = vunpack.c.h.b16 %v1627
        %v1809 = vunpack.c.l.b16 %v1628
        %v1810 = vunpack.c.h.b16 %v1628
        %v1811 = vunpack.c.l.b16 %v1629
        %v1812 = vunpack.c.h.b16 %v1629
        %v1813 = vunpack.c.l.b16 %v1630
        %v1814 = vunpack.c.h.b16 %v1630
        %v1815 = vunpack.c.l.b16 %v1631
        %v1816 = vunpack.c.h.b16 %v1631
        %v1817 = vunpack.c.l.b16 %v1632
        %v1818 = vunpack.c.h.b16 %v1632
        %v1819 = vunpack.c.l.b16 %v1633
        %v1820 = vunpack.c.h.b16 %v1633
        %v1821 = vunpack.c.l.b16 %v1634
        %v1822 = vunpack.c.h.b16 %v1634
        %v1823 = vunpack.c.l.b16 %v1635
        %v1824 = vunpack.c.h.b16 %v1635
        %v1825 = vunpack.c.l.b16 %v1636
        %v1826 = vunpack.c.h.b16 %v1636
        %v1827 = vunpack.c.l.b16 %v1637
        %v1828 = vunpack.c.h.b16 %v1637
        %v1829 = vunpack.c.l.b16 %v1638
        %v1830 = vunpack.c.h.b16 %v1638
        %v1831 = vpack.c.b16 %v1703, %v1703
        %v1832 = vpack.c.b16 %v1704, %v1704
        %v1833 = vpack.c.b16 %v1705, %v1705
        %v1834 = vpack.c.b16 %v1706, %v1706
        %v1835 = vpack.c.b16 %v1707, %v1707
        %v1836 = vpack.c.b16 %v1708, %v1708
        %v1837 = vpack.c.b16 %v1709, %v1709
        %v1838 = vpack.c.b16 %v1710, %v1710
        %v1839 = vpack.c.b16 %v1711, %v1711
        %v1840 = vpack.c.b16 %v1712, %v1712
        %v1841 = vpack.c.b16 %v1713, %v1713
        %v1842 = vpack.c.b16 %v1714, %v1714
        %v1843 = vpack.c.b16 %v1715, %v1715
        %v1844 = vpack.c.b16 %v1716, %v1716
        %v1845 = vpack.c.b16 %v1717, %v1717
        %v1846 = vpack.c.b16 %v1718, %v1718
        %v1847 = vpack.c.b16 %v1719, %v1719
        %v1848 = vpack.c.b16 %v1720, %v1720
        %v1849 = vpack.c.b16 %v1721, %v1721
        %v1850 = vpack.c.b16 %v1722, %v1722
        %v1851 = vpack.c.b16 %v1723, %v1723
        %v1852 = vpack.c.b16 %v1724, %v1724
        %v1853 = vpack.c.b16 %v1725, %v1725
        %v1854 = vpack.c.b16 %v1726, %v1726
        %v1855 = vpack.c.b16 %v1727, %v1727
        %v1856 = vpack.c.b16 %v1728, %v1728
        %v1857 = vpack.c.b16 %v1729, %v1729
        %v1858 = vpack.c.b16 %v1730, %v1730
        %v1859 = vpack.c.b16 %v1731, %v1731
        %v1860 = vpack.c.b16 %v1732, %v1732
        %v1861 = vpack.c.b16 %v1733, %v1733
        %v1862 = vpack.c.b16 %v1734, %v1734
        %v1863 = vpack.c.b16 %v1735, %v1735
        %v1864 = vpack.c.b16 %v1736, %v1736
        %v1865 = vpack.c.b16 %v1737, %v1737
        %v1866 = vpack.c.b16 %v1738, %v1738
        %v1867 = vpack.c.b16 %v1739, %v1739
        %v1868 = vpack.c.b16 %v1740, %v1740
        %v1869 = vpack.c.b16 %v1741, %v1741
        %v1870 = vpack.c.b16 %v1742, %v1742
        %v1871 = vpack.c.b16 %v1743, %v1743
        %v1872 = vpack.c.b16 %v1744, %v1744
        %v1873 = vpack.c.b16 %v1745, %v1745
        %v1874 = vpack.c.b16 %v1746, %v1746
        %v1875 = vpack.c.b16 %v1747, %v1747
        %v1876 = vpack.c.b16 %v1748, %v1748
        %v1877 = vpack.c.b16 %v1749, %v1749
        %v1878 = vpack.c.b16 %v1750, %v1750
        %v1879 = vpack.c.b16 %v1751, %v1751
        %v1880 = vpack.c.b16 %v1752, %v1752
        %v1881 = vpack.c.b16 %v1753, %v1753
        %v1882 = vpack.c.b16 %v1754, %v1754
        %v1883 = vpack.c.b16 %v1755, %v1755
        %v1884 = vpack.c.b16 %v1756, %v1756
        %v1885 = vpack.c.b16 %v1757, %v1757
        %v1886 = vpack.c.b16 %v1758, %v1758
        %v1887 = vpack.c.b16 %v1759, %v1759
        %v1888 = vpack.c.b16 %v1760, %v1760
        %v1889 = vpack.c.b16 %v1761, %v1761
        %v1890 = vpack.c.b16 %v1762, %v1762
        %v1891 = vpack.c.b16 %v1763, %v1763
        %v1892 = vpack.c.b16 %v1764, %v1764
        %v1893 = vpack.c.b16 %v1765, %v1765
        %v1894 = vpack.c.b16 %v1766, %v1766
        %v1895 = vpack.c.b16 %v1767, %v1767
        %v1896 = vpack.c.b16 %v1768, %v1768
        %v1897 = vpack.c.b16 %v1769, %v1769
        %v1898 = vpack.c.b16 %v1770, %v1770
        %v1899 = vpack.c.b16 %v1771, %v1771
        %v1900 = vpack.c.b16 %v1772, %v1772
        %v1901 = vpack.c.b16 %v1773, %v1773
        %v1902 = vpack.c.b16 %v1774, %v1774
        %v1903 = vpack.c.b16 %v1775, %v1775
        %v1904 = vpack.c.b16 %v1776, %v1776
        %v1905 = vpack.c.b16 %v1777, %v1777
        %v1906 = vpack.c.b16 %v1778, %v1778
        %v1907 = vpack.c.b16 %v1779, %v1779
        %v1908 = vpack.c.b16 %v1780, %v1780
        %v1909 = vpack.c.b16 %v1781, %v1781
        %v1910 = vpack.c.b16 %v1782, %v1782
        %v1911 = vpack.c.b16 %v1783, %v1783
        %v1912 = vpack.c.b16 %v1784, %v1784
        %v1913 = vpack.c.b16 %v1785, %v1785
        %v1914 = vpack.c.b16 %v1786, %v1786
        %v1915 = vpack.c.b16 %v1787, %v1787
        %v1916 = vpack.c.b16 %v1788, %v1788
        %v1917 = vpack.c.b16 %v1789, %v1789
        %v1918 = vpack.c.b16 %v1790, %v1790
        %v1919 = vpack.c.b16 %v1791, %v1791
        %v1920 = vpack.c.b16 %v1792, %v1792
        %v1921 = vpack.c.b16 %v1793, %v1793
        %v1922 = vpack.c.b16 %v1794, %v1794
        %v1923 = vpack.c.b16 %v1795, %v1795
        %v1924 = vpack.c.b16 %v1796, %v1796
        %v1925 = vpack.c.b16 %v1797, %v1797
        %v1926 = vpack.c.b16 %v1798, %v1798
        %v1927 = vpack.c.b16 %v1799, %v1799
        %v1928 = vpack.c.b16 %v1800, %v1800
        %v1929 = vpack.c.b16 %v1801, %v1801
        %v1930 = vpack.c.b16 %v1802, %v1802
        %v1931 = vpack.c.b16 %v1803, %v1803
        %v1932 = vpack.c.b16 %v1804, %v1804
        %v1933 = vpack.c.b16 %v1805, %v1805
        %v1934 = vpack.c.b16 %v1806, %v1806
        %v1935 = vpack.c.b16 %v1807, %v1807
        %v1936 = vpack.c.b16 %v1808, %v1808
        %v1937 = vpack.c.b16 %v1809, %v1809
        %v1938 = vpack.c.b16 %v1810, %v1810
        %v1939 = vpack.c.b16 %v1811, %v1811
        %v1940 = vpack.c.b16 %v1812, %v1812
        %v1941 = vpack.c.b16 %v1813, %v1813
        %v1942 = vpack.c.b16 %v1814, %v1814
        %v1943 = vpack.c.b16 %v1815, %v1815
        %v1944 = vpack.c.b16 %v1816, %v1816
        %v1945 = vpack.c.b16 %v1817, %v1817
        %v1946 = vpack.c.b16 %v1818, %v1818
        %v1947 = vpack.c.b16 %v1819, %v1819
        %v1948 = vpack.c.b16 %v1820, %v1820
        %v1949 = vpack.c.b16 %v1821, %v1821
        %v1950 = vpack.c.b16 %v1822, %v1822
        %v1951 = vpack.c.b16 %v1823, %v1823
        %v1952 = vpack.c.b16 %v1824, %v1824
        %v1953 = vpack.c.b16 %v1825, %v1825
        %v1954 = vpack.c.b16 %v1826, %v1826
        %v1955 = vpack.c.b16 %v1827, %v1827
        %v1956 = vpack.c.b16 %v1828, %v1828
        %v1957 = vpack.c.b16 %v1829, %v1829
        %v1958 = vpack.c.b16 %v1830, %v1830
        %vm2087 = vcmask 257024
        %2088 = vst.msk [vmem:[%s210] sm:$0xf] %vm2087, %v1831
        %2089 = vst.msk [vmem:[%s210 + $0x4] sm:$0xf] %vm2087, %v1832
        %2090 = vst.msk [vmem:[%s210 + $0x8] sm:$0xf] %vm2087, %v1833
        %2091 = vst.msk [vmem:[%s210 + $0xc] sm:$0xf] %vm2087, %v1834
        %2092 = vst.msk [vmem:[%s210 + $0x10] sm:$0xf] %vm2087, %v1835
        %2093 = vst.msk [vmem:[%s210 + $0x14] sm:$0xf] %vm2087, %v1836
        %2094 = vst.msk [vmem:[%s210 + $0x18] sm:$0xf] %vm2087, %v1837
        %2095 = vst.msk [vmem:[%s210 + $0x1c] sm:$0xf] %vm2087, %v1838
        %2096 = vst.msk [vmem:[%s210 + $0x20] sm:$0xf] %vm2087, %v1839
        %2097 = vst.msk [vmem:[%s210 + $0x24] sm:$0xf] %vm2087, %v1840
        %2098 = vst.msk [vmem:[%s210 + $0x28] sm:$0xf] %vm2087, %v1841
        %2099 = vst.msk [vmem:[%s210 + $0x2c] sm:$0xf] %vm2087, %v1842
        %2100 = vst.msk [vmem:[%s210 + $0x30] sm:$0xf] %vm2087, %v1843
        %2101 = vst.msk [vmem:[%s210 + $0x34] sm:$0xf] %vm2087, %v1844
        %2102 = vst.msk [vmem:[%s210 + $0x38] sm:$0xf] %vm2087, %v1845
        %2103 = vst.msk [vmem:[%s210 + $0x3c] sm:$0xf] %vm2087, %v1846
        %2104 = vst.msk [vmem:[%s210 + $0x40] sm:$0xf] %vm2087, %v1847
        %2105 = vst.msk [vmem:[%s210 + $0x44] sm:$0xf] %vm2087, %v1848
        %2106 = vst.msk [vmem:[%s210 + $0x48] sm:$0xf] %vm2087, %v1849
        %2107 = vst.msk [vmem:[%s210 + $0x4c] sm:$0xf] %vm2087, %v1850
        %2108 = vst.msk [vmem:[%s210 + $0x50] sm:$0xf] %vm2087, %v1851
        %2109 = vst.msk [vmem:[%s210 + $0x54] sm:$0xf] %vm2087, %v1852
        %2110 = vst.msk [vmem:[%s210 + $0x58] sm:$0xf] %vm2087, %v1853
        %2111 = vst.msk [vmem:[%s210 + $0x5c] sm:$0xf] %vm2087, %v1854
        %2112 = vst.msk [vmem:[%s210 + $0x60] sm:$0xf] %vm2087, %v1855
        %2113 = vst.msk [vmem:[%s210 + $0x64] sm:$0xf] %vm2087, %v1856
        %2114 = vst.msk [vmem:[%s210 + $0x68] sm:$0xf] %vm2087, %v1857
        %2115 = vst.msk [vmem:[%s210 + $0x6c] sm:$0xf] %vm2087, %v1858
        %2116 = vst.msk [vmem:[%s210 + $0x70] sm:$0xf] %vm2087, %v1859
        %2117 = vst.msk [vmem:[%s210 + $0x74] sm:$0xf] %vm2087, %v1860
        %2118 = vst.msk [vmem:[%s210 + $0x78] sm:$0xf] %vm2087, %v1861
        %2119 = vst.msk [vmem:[%s210 + $0x7c] sm:$0xf] %vm2087, %v1862
        %2120 = vst.msk [vmem:[%s210 + $0x80] sm:$0xf] %vm2087, %v1863
        %2121 = vst.msk [vmem:[%s210 + $0x84] sm:$0xf] %vm2087, %v1864
        %2122 = vst.msk [vmem:[%s210 + $0x88] sm:$0xf] %vm2087, %v1865
        %2123 = vst.msk [vmem:[%s210 + $0x8c] sm:$0xf] %vm2087, %v1866
        %2124 = vst.msk [vmem:[%s210 + $0x90] sm:$0xf] %vm2087, %v1867
        %2125 = vst.msk [vmem:[%s210 + $0x94] sm:$0xf] %vm2087, %v1868
        %2126 = vst.msk [vmem:[%s210 + $0x98] sm:$0xf] %vm2087, %v1869
        %2127 = vst.msk [vmem:[%s210 + $0x9c] sm:$0xf] %vm2087, %v1870
        %2128 = vst.msk [vmem:[%s210 + $0xa0] sm:$0xf] %vm2087, %v1871
        %2129 = vst.msk [vmem:[%s210 + $0xa4] sm:$0xf] %vm2087, %v1872
        %2130 = vst.msk [vmem:[%s210 + $0xa8] sm:$0xf] %vm2087, %v1873
        %2131 = vst.msk [vmem:[%s210 + $0xac] sm:$0xf] %vm2087, %v1874
        %2132 = vst.msk [vmem:[%s210 + $0xb0] sm:$0xf] %vm2087, %v1875
        %2133 = vst.msk [vmem:[%s210 + $0xb4] sm:$0xf] %vm2087, %v1876
        %2134 = vst.msk [vmem:[%s210 + $0xb8] sm:$0xf] %vm2087, %v1877
        %2135 = vst.msk [vmem:[%s210 + $0xbc] sm:$0xf] %vm2087, %v1878
        %2136 = vst.msk [vmem:[%s210 + $0xc0] sm:$0xf] %vm2087, %v1879
        %2137 = vst.msk [vmem:[%s210 + $0xc4] sm:$0xf] %vm2087, %v1880
        %2138 = vst.msk [vmem:[%s210 + $0xc8] sm:$0xf] %vm2087, %v1881
        %2139 = vst.msk [vmem:[%s210 + $0xcc] sm:$0xf] %vm2087, %v1882
        %2140 = vst.msk [vmem:[%s210 + $0xd0] sm:$0xf] %vm2087, %v1883
        %2141 = vst.msk [vmem:[%s210 + $0xd4] sm:$0xf] %vm2087, %v1884
        %2142 = vst.msk [vmem:[%s210 + $0xd8] sm:$0xf] %vm2087, %v1885
        %2143 = vst.msk [vmem:[%s210 + $0xdc] sm:$0xf] %vm2087, %v1886
        %2144 = vst.msk [vmem:[%s210 + $0xe0] sm:$0xf] %vm2087, %v1887
        %2145 = vst.msk [vmem:[%s210 + $0xe4] sm:$0xf] %vm2087, %v1888
        %2146 = vst.msk [vmem:[%s210 + $0xe8] sm:$0xf] %vm2087, %v1889
        %2147 = vst.msk [vmem:[%s210 + $0xec] sm:$0xf] %vm2087, %v1890
        %2148 = vst.msk [vmem:[%s210 + $0xf0] sm:$0xf] %vm2087, %v1891
        %2149 = vst.msk [vmem:[%s210 + $0xf4] sm:$0xf] %vm2087, %v1892
        %2150 = vst.msk [vmem:[%s210 + $0xf8] sm:$0xf] %vm2087, %v1893
        %2151 = vst.msk [vmem:[%s210 + $0xfc] sm:$0xf] %vm2087, %v1894
        %2152 = vst.msk [vmem:[%s210 + $0x100] sm:$0xf] %vm2087, %v1895
        %2153 = vst.msk [vmem:[%s210 + $0x104] sm:$0xf] %vm2087, %v1896
        %2154 = vst.msk [vmem:[%s210 + $0x108] sm:$0xf] %vm2087, %v1897
        %2155 = vst.msk [vmem:[%s210 + $0x10c] sm:$0xf] %vm2087, %v1898
        %2156 = vst.msk [vmem:[%s210 + $0x110] sm:$0xf] %vm2087, %v1899
        %2157 = vst.msk [vmem:[%s210 + $0x114] sm:$0xf] %vm2087, %v1900
        %2158 = vst.msk [vmem:[%s210 + $0x118] sm:$0xf] %vm2087, %v1901
        %2159 = vst.msk [vmem:[%s210 + $0x11c] sm:$0xf] %vm2087, %v1902
        %2160 = vst.msk [vmem:[%s210 + $0x120] sm:$0xf] %vm2087, %v1903
        %2161 = vst.msk [vmem:[%s210 + $0x124] sm:$0xf] %vm2087, %v1904
        %2162 = vst.msk [vmem:[%s210 + $0x128] sm:$0xf] %vm2087, %v1905
        %2163 = vst.msk [vmem:[%s210 + $0x12c] sm:$0xf] %vm2087, %v1906
        %2164 = vst.msk [vmem:[%s210 + $0x130] sm:$0xf] %vm2087, %v1907
        %2165 = vst.msk [vmem:[%s210 + $0x134] sm:$0xf] %vm2087, %v1908
        %2166 = vst.msk [vmem:[%s210 + $0x138] sm:$0xf] %vm2087, %v1909
        %2167 = vst.msk [vmem:[%s210 + $0x13c] sm:$0xf] %vm2087, %v1910
        %2168 = vst.msk [vmem:[%s210 + $0x140] sm:$0xf] %vm2087, %v1911
        %2169 = vst.msk [vmem:[%s210 + $0x144] sm:$0xf] %vm2087, %v1912
        %2170 = vst.msk [vmem:[%s210 + $0x148] sm:$0xf] %vm2087, %v1913
        %2171 = vst.msk [vmem:[%s210 + $0x14c] sm:$0xf] %vm2087, %v1914
        %2172 = vst.msk [vmem:[%s210 + $0x150] sm:$0xf] %vm2087, %v1915
        %2173 = vst.msk [vmem:[%s210 + $0x154] sm:$0xf] %vm2087, %v1916
        %2174 = vst.msk [vmem:[%s210 + $0x158] sm:$0xf] %vm2087, %v1917
        %2175 = vst.msk [vmem:[%s210 + $0x15c] sm:$0xf] %vm2087, %v1918
        %2176 = vst.msk [vmem:[%s210 + $0x160] sm:$0xf] %vm2087, %v1919
        %2177 = vst.msk [vmem:[%s210 + $0x164] sm:$0xf] %vm2087, %v1920
        %2178 = vst.msk [vmem:[%s210 + $0x168] sm:$0xf] %vm2087, %v1921
        %2179 = vst.msk [vmem:[%s210 + $0x16c] sm:$0xf] %vm2087, %v1922
        %2180 = vst.msk [vmem:[%s210 + $0x170] sm:$0xf] %vm2087, %v1923
        %2181 = vst.msk [vmem:[%s210 + $0x174] sm:$0xf] %vm2087, %v1924
        %2182 = vst.msk [vmem:[%s210 + $0x178] sm:$0xf] %vm2087, %v1925
        %2183 = vst.msk [vmem:[%s210 + $0x17c] sm:$0xf] %vm2087, %v1926
        %2184 = vst.msk [vmem:[%s210 + $0x180] sm:$0xf] %vm2087, %v1927
        %2185 = vst.msk [vmem:[%s210 + $0x184] sm:$0xf] %vm2087, %v1928
        %2186 = vst.msk [vmem:[%s210 + $0x188] sm:$0xf] %vm2087, %v1929
        %2187 = vst.msk [vmem:[%s210 + $0x18c] sm:$0xf] %vm2087, %v1930
        %2188 = vst.msk [vmem:[%s210 + $0x190] sm:$0xf] %vm2087, %v1931
        %2189 = vst.msk [vmem:[%s210 + $0x194] sm:$0xf] %vm2087, %v1932
        %2190 = vst.msk [vmem:[%s210 + $0x198] sm:$0xf] %vm2087, %v1933
        %2191 = vst.msk [vmem:[%s210 + $0x19c] sm:$0xf] %vm2087, %v1934
        %2192 = vst.msk [vmem:[%s210 + $0x1a0] sm:$0xf] %vm2087, %v1935
        %2193 = vst.msk [vmem:[%s210 + $0x1a4] sm:$0xf] %vm2087, %v1936
        %2194 = vst.msk [vmem:[%s210 + $0x1a8] sm:$0xf] %vm2087, %v1937
        %2195 = vst.msk [vmem:[%s210 + $0x1ac] sm:$0xf] %vm2087, %v1938
        %2196 = vst.msk [vmem:[%s210 + $0x1b0] sm:$0xf] %vm2087, %v1939
        %2197 = vst.msk [vmem:[%s210 + $0x1b4] sm:$0xf] %vm2087, %v1940
        %2198 = vst.msk [vmem:[%s210 + $0x1b8] sm:$0xf] %vm2087, %v1941
        %2199 = vst.msk [vmem:[%s210 + $0x1bc] sm:$0xf] %vm2087, %v1942
        %2200 = vst.msk [vmem:[%s210 + $0x1c0] sm:$0xf] %vm2087, %v1943
        %2201 = vst.msk [vmem:[%s210 + $0x1c4] sm:$0xf] %vm2087, %v1944
        %2202 = vst.msk [vmem:[%s210 + $0x1c8] sm:$0xf] %vm2087, %v1945
        %2203 = vst.msk [vmem:[%s210 + $0x1cc] sm:$0xf] %vm2087, %v1946
        %2204 = vst.msk [vmem:[%s210 + $0x1d0] sm:$0xf] %vm2087, %v1947
        %2205 = vst.msk [vmem:[%s210 + $0x1d4] sm:$0xf] %vm2087, %v1948
        %2206 = vst.msk [vmem:[%s210 + $0x1d8] sm:$0xf] %vm2087, %v1949
        %2207 = vst.msk [vmem:[%s210 + $0x1dc] sm:$0xf] %vm2087, %v1950
        %2208 = vst.msk [vmem:[%s210 + $0x1e0] sm:$0xf] %vm2087, %v1951
        %2209 = vst.msk [vmem:[%s210 + $0x1e4] sm:$0xf] %vm2087, %v1952
        %2210 = vst.msk [vmem:[%s210 + $0x1e8] sm:$0xf] %vm2087, %v1953
        %2211 = vst.msk [vmem:[%s210 + $0x1ec] sm:$0xf] %vm2087, %v1954
        %2212 = vst.msk [vmem:[%s210 + $0x1f0] sm:$0xf] %vm2087, %v1955
        %2213 = vst.msk [vmem:[%s210 + $0x1f4] sm:$0xf] %vm2087, %v1956
        %2214 = vst.msk [vmem:[%s210 + $0x1f8] sm:$0xf] %vm2087, %v1957
        %2215 = vst.msk [vmem:[%s210 + $0x1fc] sm:$0xf] %vm2087, %v1958
        %s2216 = sand.u32 %s114, 1
        %s2217 = sand.u32 %s114, 1
        %s2218 = smul.addr %s2217, 512
        %s2219 = scalar_lea.vmem [#allocation2], %s2218
        // Predicated region
        $region33: #{_conv_bn_relu.1} parent=31 // pred_check
          %p2220 = pneg %p124
        $region34: #{_conv_bn_relu.1} parent=31 // pred_check_branch
          %2222 = sbr.rel (%p2220) target = $region36
        $region35: #{_conv_bn_relu.1} parent=31 // pred_region
          %s2223 = smul.u32 128, %s18
          %s2224 = ssub.s32 2551, %s2223
          %p2225 = scmp.lt.s32.totalorder %s2224, 128
          %s2226 = scalar_select %p2225, %s2224, 128
          %s2227 = smul.u32 64, %s2226
          %p2228 = scmp.ne.s32.totalorder 0, %s2227
          %s2229 = sadd.s32 %s19, %s2223
          %s2230 = smul.addr %s2229, 4
          %s2231 = scalar_lea.vmem %s3, %s2230
          // Predicated region
          $region37: #{_conv_bn_relu.1} parent=35 // pred_check
            %p2232 = pneg %p2228
          $region38: #{_conv_bn_relu.1} parent=35 // pred_check_branch
            %2234 = sbr.rel (%p2232) target = $region40
          $region39: #{_conv_bn_relu.1} parent=35 // pred_region
            // Predicated region
            $region41: #{_conv_bn_relu.1} parent=39 // pred_check
              _
            $region42: #{_conv_bn_relu.1} parent=39 // pred_check_branch
              %2236 = sbr.rel target = $region44
            $region43: #{_conv_bn_relu.1} parent=39 // pred_region
              // Predicated region
              $region63: #{_conv_bn_relu.1} parent=43 // pred_check
                _
              $region64: #{_conv_bn_relu.1} parent=43 // pred_check_branch
                %2411 = sbr.rel (0) target = $region66
              $region65: #{_conv_bn_relu.1} parent=43 // pred_region
                %s2413 = sshrl.u32 %s2226, 6
                // While loop
                $region67: #{_conv_bn_relu.1} parent=65 // loop_pre_header
                  _
                $region68: #{_conv_bn_relu.1} parent=65 // loop_header
                  %s2415 = sphi 0, %s2417
                  %p2416 = scmp.ge.s32.totalorder %s2415, %s2413
                  %s2420 = sphi 0, %s2553
                  %s2421 = sphi %s2219, %s2556
                  %s2422 = sphi %s2231, %s2557
                $region69: #{_conv_bn_relu.1} parent=65 // loop_header_branch
                  %2419 = sbr.rel (%p2416) target = $region73
                $region70: #{_conv_bn_relu.1} parent=65 // loop_body
                  %v2423 = vld [vmem:[%s2421] sm:$0xf]
                  %2424 = vst [vmem:[%s2422] sm:$0xf] %v2423
                  %v2425 = vld [vmem:[%s2421 + $0x4] sm:$0xf]
                  %2426 = vst [vmem:[%s2422 + $0x4] sm:$0xf] %v2425
                  %v2427 = vld [vmem:[%s2421 + $0x8] sm:$0xf]
                  %2428 = vst [vmem:[%s2422 + $0x8] sm:$0xf] %v2427
                  %v2429 = vld [vmem:[%s2421 + $0xc] sm:$0xf]
                  %2430 = vst [vmem:[%s2422 + $0xc] sm:$0xf] %v2429
                  %v2431 = vld [vmem:[%s2421 + $0x10] sm:$0xf]
                  %2432 = vst [vmem:[%s2422 + $0x10] sm:$0xf] %v2431
                  %v2433 = vld [vmem:[%s2421 + $0x14] sm:$0xf]
                  %2434 = vst [vmem:[%s2422 + $0x14] sm:$0xf] %v2433
                  %v2435 = vld [vmem:[%s2421 + $0x18] sm:$0xf]
                  %2436 = vst [vmem:[%s2422 + $0x18] sm:$0xf] %v2435
                  %v2437 = vld [vmem:[%s2421 + $0x1c] sm:$0xf]
                  %2438 = vst [vmem:[%s2422 + $0x1c] sm:$0xf] %v2437
                  %v2439 = vld [vmem:[%s2421 + $0x20] sm:$0xf]
                  %2440 = vst [vmem:[%s2422 + $0x20] sm:$0xf] %v2439
                  %v2441 = vld [vmem:[%s2421 + $0x24] sm:$0xf]
                  %2442 = vst [vmem:[%s2422 + $0x24] sm:$0xf] %v2441
                  %v2443 = vld [vmem:[%s2421 + $0x28] sm:$0xf]
                  %2444 = vst [vmem:[%s2422 + $0x28] sm:$0xf] %v2443
                  %v2445 = vld [vmem:[%s2421 + $0x2c] sm:$0xf]
                  %2446 = vst [vmem:[%s2422 + $0x2c] sm:$0xf] %v2445
                  %v2447 = vld [vmem:[%s2421 + $0x30] sm:$0xf]
                  %2448 = vst [vmem:[%s2422 + $0x30] sm:$0xf] %v2447
                  %v2449 = vld [vmem:[%s2421 + $0x34] sm:$0xf]
                  %2450 = vst [vmem:[%s2422 + $0x34] sm:$0xf] %v2449
                  %v2451 = vld [vmem:[%s2421 + $0x38] sm:$0xf]
                  %2452 = vst [vmem:[%s2422 + $0x38] sm:$0xf] %v2451
                  %v2453 = vld [vmem:[%s2421 + $0x3c] sm:$0xf]
                  %2454 = vst [vmem:[%s2422 + $0x3c] sm:$0xf] %v2453
                  %v2455 = vld [vmem:[%s2421 + $0x40] sm:$0xf]
                  %2456 = vst [vmem:[%s2422 + $0x40] sm:$0xf] %v2455
                  %v2457 = vld [vmem:[%s2421 + $0x44] sm:$0xf]
                  %2458 = vst [vmem:[%s2422 + $0x44] sm:$0xf] %v2457
                  %v2459 = vld [vmem:[%s2421 + $0x48] sm:$0xf]
                  %2460 = vst [vmem:[%s2422 + $0x48] sm:$0xf] %v2459
                  %v2461 = vld [vmem:[%s2421 + $0x4c] sm:$0xf]
                  %2462 = vst [vmem:[%s2422 + $0x4c] sm:$0xf] %v2461
                  %v2463 = vld [vmem:[%s2421 + $0x50] sm:$0xf]
                  %2464 = vst [vmem:[%s2422 + $0x50] sm:$0xf] %v2463
                  %v2465 = vld [vmem:[%s2421 + $0x54] sm:$0xf]
                  %2466 = vst [vmem:[%s2422 + $0x54] sm:$0xf] %v2465
                  %v2467 = vld [vmem:[%s2421 + $0x58] sm:$0xf]
                  %2468 = vst [vmem:[%s2422 + $0x58] sm:$0xf] %v2467
                  %v2469 = vld [vmem:[%s2421 + $0x5c] sm:$0xf]
                  %2470 = vst [vmem:[%s2422 + $0x5c] sm:$0xf] %v2469
                  %v2471 = vld [vmem:[%s2421 + $0x60] sm:$0xf]
                  %2472 = vst [vmem:[%s2422 + $0x60] sm:$0xf] %v2471
                  %v2473 = vld [vmem:[%s2421 + $0x64] sm:$0xf]
                  %2474 = vst [vmem:[%s2422 + $0x64] sm:$0xf] %v2473
                  %v2475 = vld [vmem:[%s2421 + $0x68] sm:$0xf]
                  %2476 = vst [vmem:[%s2422 + $0x68] sm:$0xf] %v2475
                  %v2477 = vld [vmem:[%s2421 + $0x6c] sm:$0xf]
                  %2478 = vst [vmem:[%s2422 + $0x6c] sm:$0xf] %v2477
                  %v2479 = vld [vmem:[%s2421 + $0x70] sm:$0xf]
                  %2480 = vst [vmem:[%s2422 + $0x70] sm:$0xf] %v2479
                  %v2481 = vld [vmem:[%s2421 + $0x74] sm:$0xf]
                  %2482 = vst [vmem:[%s2422 + $0x74] sm:$0xf] %v2481
                  %v2483 = vld [vmem:[%s2421 + $0x78] sm:$0xf]
                  %2484 = vst [vmem:[%s2422 + $0x78] sm:$0xf] %v2483
                  %v2485 = vld [vmem:[%s2421 + $0x7c] sm:$0xf]
                  %2486 = vst [vmem:[%s2422 + $0x7c] sm:$0xf] %v2485
                  %v2487 = vld [vmem:[%s2421 + $0x80] sm:$0xf]
                  %2488 = vst [vmem:[%s2422 + $0x80] sm:$0xf] %v2487
                  %v2489 = vld [vmem:[%s2421 + $0x84] sm:$0xf]
                  %2490 = vst [vmem:[%s2422 + $0x84] sm:$0xf] %v2489
                  %v2491 = vld [vmem:[%s2421 + $0x88] sm:$0xf]
                  %2492 = vst [vmem:[%s2422 + $0x88] sm:$0xf] %v2491
                  %v2493 = vld [vmem:[%s2421 + $0x8c] sm:$0xf]
                  %2494 = vst [vmem:[%s2422 + $0x8c] sm:$0xf] %v2493
                  %v2495 = vld [vmem:[%s2421 + $0x90] sm:$0xf]
                  %2496 = vst [vmem:[%s2422 + $0x90] sm:$0xf] %v2495
                  %v2497 = vld [vmem:[%s2421 + $0x94] sm:$0xf]
                  %2498 = vst [vmem:[%s2422 + $0x94] sm:$0xf] %v2497
                  %v2499 = vld [vmem:[%s2421 + $0x98] sm:$0xf]
                  %2500 = vst [vmem:[%s2422 + $0x98] sm:$0xf] %v2499
                  %v2501 = vld [vmem:[%s2421 + $0x9c] sm:$0xf]
                  %2502 = vst [vmem:[%s2422 + $0x9c] sm:$0xf] %v2501
                  %v2503 = vld [vmem:[%s2421 + $0xa0] sm:$0xf]
                  %2504 = vst [vmem:[%s2422 + $0xa0] sm:$0xf] %v2503
                  %v2505 = vld [vmem:[%s2421 + $0xa4] sm:$0xf]
                  %2506 = vst [vmem:[%s2422 + $0xa4] sm:$0xf] %v2505
                  %v2507 = vld [vmem:[%s2421 + $0xa8] sm:$0xf]
                  %2508 = vst [vmem:[%s2422 + $0xa8] sm:$0xf] %v2507
                  %v2509 = vld [vmem:[%s2421 + $0xac] sm:$0xf]
                  %2510 = vst [vmem:[%s2422 + $0xac] sm:$0xf] %v2509
                  %v2511 = vld [vmem:[%s2421 + $0xb0] sm:$0xf]
                  %2512 = vst [vmem:[%s2422 + $0xb0] sm:$0xf] %v2511
                  %v2513 = vld [vmem:[%s2421 + $0xb4] sm:$0xf]
                  %2514 = vst [vmem:[%s2422 + $0xb4] sm:$0xf] %v2513
                  %v2515 = vld [vmem:[%s2421 + $0xb8] sm:$0xf]
                  %2516 = vst [vmem:[%s2422 + $0xb8] sm:$0xf] %v2515
                  %v2517 = vld [vmem:[%s2421 + $0xbc] sm:$0xf]
                  %2518 = vst [vmem:[%s2422 + $0xbc] sm:$0xf] %v2517
                  %v2519 = vld [vmem:[%s2421 + $0xc0] sm:$0xf]
                  %2520 = vst [vmem:[%s2422 + $0xc0] sm:$0xf] %v2519
                  %v2521 = vld [vmem:[%s2421 + $0xc4] sm:$0xf]
                  %2522 = vst [vmem:[%s2422 + $0xc4] sm:$0xf] %v2521
                  %v2523 = vld [vmem:[%s2421 + $0xc8] sm:$0xf]
                  %2524 = vst [vmem:[%s2422 + $0xc8] sm:$0xf] %v2523
                  %v2525 = vld [vmem:[%s2421 + $0xcc] sm:$0xf]
                  %2526 = vst [vmem:[%s2422 + $0xcc] sm:$0xf] %v2525
                  %v2527 = vld [vmem:[%s2421 + $0xd0] sm:$0xf]
                  %2528 = vst [vmem:[%s2422 + $0xd0] sm:$0xf] %v2527
                  %v2529 = vld [vmem:[%s2421 + $0xd4] sm:$0xf]
                  %2530 = vst [vmem:[%s2422 + $0xd4] sm:$0xf] %v2529
                  %v2531 = vld [vmem:[%s2421 + $0xd8] sm:$0xf]
                  %2532 = vst [vmem:[%s2422 + $0xd8] sm:$0xf] %v2531
                  %v2533 = vld [vmem:[%s2421 + $0xdc] sm:$0xf]
                  %2534 = vst [vmem:[%s2422 + $0xdc] sm:$0xf] %v2533
                  %v2535 = vld [vmem:[%s2421 + $0xe0] sm:$0xf]
                  %2536 = vst [vmem:[%s2422 + $0xe0] sm:$0xf] %v2535
                  %v2537 = vld [vmem:[%s2421 + $0xe4] sm:$0xf]
                  %2538 = vst [vmem:[%s2422 + $0xe4] sm:$0xf] %v2537
                  %v2539 = vld [vmem:[%s2421 + $0xe8] sm:$0xf]
                  %2540 = vst [vmem:[%s2422 + $0xe8] sm:$0xf] %v2539
                  %v2541 = vld [vmem:[%s2421 + $0xec] sm:$0xf]
                  %2542 = vst [vmem:[%s2422 + $0xec] sm:$0xf] %v2541
                  %v2543 = vld [vmem:[%s2421 + $0xf0] sm:$0xf]
                  %2544 = vst [vmem:[%s2422 + $0xf0] sm:$0xf] %v2543
                  %v2545 = vld [vmem:[%s2421 + $0xf4] sm:$0xf]
                  %2546 = vst [vmem:[%s2422 + $0xf4] sm:$0xf] %v2545
                  %v2547 = vld [vmem:[%s2421 + $0xf8] sm:$0xf]
                  %2548 = vst [vmem:[%s2422 + $0xf8] sm:$0xf] %v2547
                  %v2549 = vld [vmem:[%s2421 + $0xfc] sm:$0xf]
                  %2550 = vst [vmem:[%s2422 + $0xfc] sm:$0xf] %v2549
                  %s2551 = sadd.s32 1, %s2420
                  %p2552 = scmp.ge.s32.totalorder %s2551, %s2413
                  %s2553 = scalar_select %p2552, 0, %s2551
                  %s2554 = smul.u32 %s2553, 256
                  %s2555 = smul.u32 %s2553, 256
                  %s2556 = scalar_lea.vmem %s2219, %s2554 [#allocation2]
                  %s2557 = scalar_lea.vmem %s2231, %s2555
                $region71: #{_conv_bn_relu.1} parent=65 // loop_footer
                  %s2417 = sadd.s32 %s2415, 1
                $region72: #{_conv_bn_relu.1} parent=65 // loop_footer_branch
                  %2414 = sbr.rel target = $region68
                $region73: #{_conv_bn_relu.1} parent=65 // loop_exit
                  _
                %s2558 = sshrl.u32 %s2226, 6
                %s2559 = sand.u32 %s2226, 63
                %s2560 = smul.u32 %s2558, 64
                %s2561 = smul.u32 4, %s2560
                %s2562 = scalar_lea.vmem %s2219, %s2561 [#allocation2]
                %s2563 = smul.u32 4, %s2560
                %s2564 = scalar_lea.vmem %s2231, %s2563
                // While loop
                $region74: #{_conv_bn_relu.1} parent=65 // loop_pre_header
                  _
                $region75: #{_conv_bn_relu.1} parent=65 // loop_header
                  %s2566 = sphi 0, %s2568
                  %p2567 = scmp.ge.s32.totalorder %s2566, %s2559
                  %s2571 = sphi 0, %s2578
                  %s2572 = sphi %s2562, %s2581
                  %s2573 = sphi %s2564, %s2582
                $region76: #{_conv_bn_relu.1} parent=65 // loop_header_branch
                  %2570 = sbr.rel (%p2567) target = $region80
                $region77: #{_conv_bn_relu.1} parent=65 // loop_body
                  %v2574 = vld [vmem:[%s2572] sm:$0xf]
                  %2575 = vst [vmem:[%s2573] sm:$0xf] %v2574
                  %s2576 = sadd.s32 1, %s2571
                  %p2577 = scmp.ge.s32.totalorder %s2576, %s2559
                  %s2578 = scalar_select %p2577, 0, %s2576
                  %s2579 = smul.u32 %s2578, 4
                  %s2580 = smul.u32 %s2578, 4
                  %s2581 = scalar_lea.vmem %s2562, %s2579 [#allocation2]
                  %s2582 = scalar_lea.vmem %s2564, %s2580
                $region78: #{_conv_bn_relu.1} parent=65 // loop_footer
                  %s2568 = sadd.s32 %s2566, 1
                $region79: #{_conv_bn_relu.1} parent=65 // loop_footer_branch
                  %2565 = sbr.rel target = $region75
                $region80: #{_conv_bn_relu.1} parent=65 // loop_exit
                  _
              $region66: #{_conv_bn_relu.1} parent=43 // pred_fallthru
                _
            $region44: #{_conv_bn_relu.1} parent=39 // pred_fallthru
              _
            // Predicated region
            $region45: #{_conv_bn_relu.1} parent=39 // pred_check
              _
            $region46: #{_conv_bn_relu.1} parent=39 // pred_check_branch
              %2238 = sbr.rel (0) target = $region48
            $region47: #{_conv_bn_relu.1} parent=39 // pred_region
              %s2240 = sshrl.u32 %s2226, 6
              // While loop
              $region49: #{_conv_bn_relu.1} parent=47 // loop_pre_header
                _
              $region50: #{_conv_bn_relu.1} parent=47 // loop_header
                %s2242 = sphi 0, %s2244
                %p2243 = scmp.ge.s32.totalorder %s2242, %s2240
                %s2247 = sphi 0, %s2380
                %s2248 = sphi %s2219, %s2383
                %s2249 = sphi %s2231, %s2384
              $region51: #{_conv_bn_relu.1} parent=47 // loop_header_branch
                %2246 = sbr.rel (%p2243) target = $region55
              $region52: #{_conv_bn_relu.1} parent=47 // loop_body
                %v2250 = vld [vmem:[%s2248] sm:$0xf]
                %2251 = vst [vmem:[%s2249] sm:$0xf] %v2250
                %v2252 = vld [vmem:[%s2248 + $0x4] sm:$0xf]
                %2253 = vst [vmem:[%s2249 + $0x4] sm:$0xf] %v2252
                %v2254 = vld [vmem:[%s2248 + $0x8] sm:$0xf]
                %2255 = vst [vmem:[%s2249 + $0x8] sm:$0xf] %v2254
                %v2256 = vld [vmem:[%s2248 + $0xc] sm:$0xf]
                %2257 = vst [vmem:[%s2249 + $0xc] sm:$0xf] %v2256
                %v2258 = vld [vmem:[%s2248 + $0x10] sm:$0xf]
                %2259 = vst [vmem:[%s2249 + $0x10] sm:$0xf] %v2258
                %v2260 = vld [vmem:[%s2248 + $0x14] sm:$0xf]
                %2261 = vst [vmem:[%s2249 + $0x14] sm:$0xf] %v2260
                %v2262 = vld [vmem:[%s2248 + $0x18] sm:$0xf]
                %2263 = vst [vmem:[%s2249 + $0x18] sm:$0xf] %v2262
                %v2264 = vld [vmem:[%s2248 + $0x1c] sm:$0xf]
                %2265 = vst [vmem:[%s2249 + $0x1c] sm:$0xf] %v2264
                %v2266 = vld [vmem:[%s2248 + $0x20] sm:$0xf]
                %2267 = vst [vmem:[%s2249 + $0x20] sm:$0xf] %v2266
                %v2268 = vld [vmem:[%s2248 + $0x24] sm:$0xf]
                %2269 = vst [vmem:[%s2249 + $0x24] sm:$0xf] %v2268
                %v2270 = vld [vmem:[%s2248 + $0x28] sm:$0xf]
                %2271 = vst [vmem:[%s2249 + $0x28] sm:$0xf] %v2270
                %v2272 = vld [vmem:[%s2248 + $0x2c] sm:$0xf]
                %2273 = vst [vmem:[%s2249 + $0x2c] sm:$0xf] %v2272
                %v2274 = vld [vmem:[%s2248 + $0x30] sm:$0xf]
                %2275 = vst [vmem:[%s2249 + $0x30] sm:$0xf] %v2274
                %v2276 = vld [vmem:[%s2248 + $0x34] sm:$0xf]
                %2277 = vst [vmem:[%s2249 + $0x34] sm:$0xf] %v2276
                %v2278 = vld [vmem:[%s2248 + $0x38] sm:$0xf]
                %2279 = vst [vmem:[%s2249 + $0x38] sm:$0xf] %v2278
                %v2280 = vld [vmem:[%s2248 + $0x3c] sm:$0xf]
                %2281 = vst [vmem:[%s2249 + $0x3c] sm:$0xf] %v2280
                %v2282 = vld [vmem:[%s2248 + $0x40] sm:$0xf]
                %2283 = vst [vmem:[%s2249 + $0x40] sm:$0xf] %v2282
                %v2284 = vld [vmem:[%s2248 + $0x44] sm:$0xf]
                %2285 = vst [vmem:[%s2249 + $0x44] sm:$0xf] %v2284
                %v2286 = vld [vmem:[%s2248 + $0x48] sm:$0xf]
                %2287 = vst [vmem:[%s2249 + $0x48] sm:$0xf] %v2286
                %v2288 = vld [vmem:[%s2248 + $0x4c] sm:$0xf]
                %2289 = vst [vmem:[%s2249 + $0x4c] sm:$0xf] %v2288
                %v2290 = vld [vmem:[%s2248 + $0x50] sm:$0xf]
                %2291 = vst [vmem:[%s2249 + $0x50] sm:$0xf] %v2290
                %v2292 = vld [vmem:[%s2248 + $0x54] sm:$0xf]
                %2293 = vst [vmem:[%s2249 + $0x54] sm:$0xf] %v2292
                %v2294 = vld [vmem:[%s2248 + $0x58] sm:$0xf]
                %2295 = vst [vmem:[%s2249 + $0x58] sm:$0xf] %v2294
                %v2296 = vld [vmem:[%s2248 + $0x5c] sm:$0xf]
                %2297 = vst [vmem:[%s2249 + $0x5c] sm:$0xf] %v2296
                %v2298 = vld [vmem:[%s2248 + $0x60] sm:$0xf]
                %2299 = vst [vmem:[%s2249 + $0x60] sm:$0xf] %v2298
                %v2300 = vld [vmem:[%s2248 + $0x64] sm:$0xf]
                %2301 = vst [vmem:[%s2249 + $0x64] sm:$0xf] %v2300
                %v2302 = vld [vmem:[%s2248 + $0x68] sm:$0xf]
                %2303 = vst [vmem:[%s2249 + $0x68] sm:$0xf] %v2302
                %v2304 = vld [vmem:[%s2248 + $0x6c] sm:$0xf]
                %2305 = vst [vmem:[%s2249 + $0x6c] sm:$0xf] %v2304
                %v2306 = vld [vmem:[%s2248 + $0x70] sm:$0xf]
                %2307 = vst [vmem:[%s2249 + $0x70] sm:$0xf] %v2306
                %v2308 = vld [vmem:[%s2248 + $0x74] sm:$0xf]
                %2309 = vst [vmem:[%s2249 + $0x74] sm:$0xf] %v2308
                %v2310 = vld [vmem:[%s2248 + $0x78] sm:$0xf]
                %2311 = vst [vmem:[%s2249 + $0x78] sm:$0xf] %v2310
                %v2312 = vld [vmem:[%s2248 + $0x7c] sm:$0xf]
                %2313 = vst [vmem:[%s2249 + $0x7c] sm:$0xf] %v2312
                %v2314 = vld [vmem:[%s2248 + $0x80] sm:$0xf]
                %2315 = vst [vmem:[%s2249 + $0x80] sm:$0xf] %v2314
                %v2316 = vld [vmem:[%s2248 + $0x84] sm:$0xf]
                %2317 = vst [vmem:[%s2249 + $0x84] sm:$0xf] %v2316
                %v2318 = vld [vmem:[%s2248 + $0x88] sm:$0xf]
                %2319 = vst [vmem:[%s2249 + $0x88] sm:$0xf] %v2318
                %v2320 = vld [vmem:[%s2248 + $0x8c] sm:$0xf]
                %2321 = vst [vmem:[%s2249 + $0x8c] sm:$0xf] %v2320
                %v2322 = vld [vmem:[%s2248 + $0x90] sm:$0xf]
                %2323 = vst [vmem:[%s2249 + $0x90] sm:$0xf] %v2322
                %v2324 = vld [vmem:[%s2248 + $0x94] sm:$0xf]
                %2325 = vst [vmem:[%s2249 + $0x94] sm:$0xf] %v2324
                %v2326 = vld [vmem:[%s2248 + $0x98] sm:$0xf]
                %2327 = vst [vmem:[%s2249 + $0x98] sm:$0xf] %v2326
                %v2328 = vld [vmem:[%s2248 + $0x9c] sm:$0xf]
                %2329 = vst [vmem:[%s2249 + $0x9c] sm:$0xf] %v2328
                %v2330 = vld [vmem:[%s2248 + $0xa0] sm:$0xf]
                %2331 = vst [vmem:[%s2249 + $0xa0] sm:$0xf] %v2330
                %v2332 = vld [vmem:[%s2248 + $0xa4] sm:$0xf]
                %2333 = vst [vmem:[%s2249 + $0xa4] sm:$0xf] %v2332
                %v2334 = vld [vmem:[%s2248 + $0xa8] sm:$0xf]
                %2335 = vst [vmem:[%s2249 + $0xa8] sm:$0xf] %v2334
                %v2336 = vld [vmem:[%s2248 + $0xac] sm:$0xf]
                %2337 = vst [vmem:[%s2249 + $0xac] sm:$0xf] %v2336
                %v2338 = vld [vmem:[%s2248 + $0xb0] sm:$0xf]
                %2339 = vst [vmem:[%s2249 + $0xb0] sm:$0xf] %v2338
                %v2340 = vld [vmem:[%s2248 + $0xb4] sm:$0xf]
                %2341 = vst [vmem:[%s2249 + $0xb4] sm:$0xf] %v2340
                %v2342 = vld [vmem:[%s2248 + $0xb8] sm:$0xf]
                %2343 = vst [vmem:[%s2249 + $0xb8] sm:$0xf] %v2342
                %v2344 = vld [vmem:[%s2248 + $0xbc] sm:$0xf]
                %2345 = vst [vmem:[%s2249 + $0xbc] sm:$0xf] %v2344
                %v2346 = vld [vmem:[%s2248 + $0xc0] sm:$0xf]
                %2347 = vst [vmem:[%s2249 + $0xc0] sm:$0xf] %v2346
                %v2348 = vld [vmem:[%s2248 + $0xc4] sm:$0xf]
                %2349 = vst [vmem:[%s2249 + $0xc4] sm:$0xf] %v2348
                %v2350 = vld [vmem:[%s2248 + $0xc8] sm:$0xf]
                %2351 = vst [vmem:[%s2249 + $0xc8] sm:$0xf] %v2350
                %v2352 = vld [vmem:[%s2248 + $0xcc] sm:$0xf]
                %2353 = vst [vmem:[%s2249 + $0xcc] sm:$0xf] %v2352
                %v2354 = vld [vmem:[%s2248 + $0xd0] sm:$0xf]
                %2355 = vst [vmem:[%s2249 + $0xd0] sm:$0xf] %v2354
                %v2356 = vld [vmem:[%s2248 + $0xd4] sm:$0xf]
                %2357 = vst [vmem:[%s2249 + $0xd4] sm:$0xf] %v2356
                %v2358 = vld [vmem:[%s2248 + $0xd8] sm:$0xf]
                %2359 = vst [vmem:[%s2249 + $0xd8] sm:$0xf] %v2358
                %v2360 = vld [vmem:[%s2248 + $0xdc] sm:$0xf]
                %2361 = vst [vmem:[%s2249 + $0xdc] sm:$0xf] %v2360
                %v2362 = vld [vmem:[%s2248 + $0xe0] sm:$0xf]
                %2363 = vst [vmem:[%s2249 + $0xe0] sm:$0xf] %v2362
                %v2364 = vld [vmem:[%s2248 + $0xe4] sm:$0xf]
                %2365 = vst [vmem:[%s2249 + $0xe4] sm:$0xf] %v2364
                %v2366 = vld [vmem:[%s2248 + $0xe8] sm:$0xf]
                %2367 = vst [vmem:[%s2249 + $0xe8] sm:$0xf] %v2366
                %v2368 = vld [vmem:[%s2248 + $0xec] sm:$0xf]
                %2369 = vst [vmem:[%s2249 + $0xec] sm:$0xf] %v2368
                %v2370 = vld [vmem:[%s2248 + $0xf0] sm:$0xf]
                %2371 = vst [vmem:[%s2249 + $0xf0] sm:$0xf] %v2370
                %v2372 = vld [vmem:[%s2248 + $0xf4] sm:$0xf]
                %2373 = vst [vmem:[%s2249 + $0xf4] sm:$0xf] %v2372
                %v2374 = vld [vmem:[%s2248 + $0xf8] sm:$0xf]
                %2375 = vst [vmem:[%s2249 + $0xf8] sm:$0xf] %v2374
                %v2376 = vld [vmem:[%s2248 + $0xfc] sm:$0xf]
                %2377 = vst [vmem:[%s2249 + $0xfc] sm:$0xf] %v2376
                %s2378 = sadd.s32 1, %s2247
                %p2379 = scmp.ge.s32.totalorder %s2378, %s2240
                %s2380 = scalar_select %p2379, 0, %s2378
                %s2381 = smul.u32 %s2380, 256
                %s2382 = smul.u32 %s2380, 256
                %s2383 = scalar_lea.vmem %s2219, %s2381 [#allocation2]
                %s2384 = scalar_lea.vmem %s2231, %s2382
              $region53: #{_conv_bn_relu.1} parent=47 // loop_footer
                %s2244 = sadd.s32 %s2242, 1
              $region54: #{_conv_bn_relu.1} parent=47 // loop_footer_branch
                %2241 = sbr.rel target = $region50
              $region55: #{_conv_bn_relu.1} parent=47 // loop_exit
                _
              %s2385 = sshrl.u32 %s2226, 6
              %s2386 = sand.u32 %s2226, 63
              %s2387 = smul.u32 %s2385, 64
              %s2388 = smul.u32 4, %s2387
              %s2389 = scalar_lea.vmem %s2219, %s2388 [#allocation2]
              %s2390 = smul.u32 4, %s2387
              %s2391 = scalar_lea.vmem %s2231, %s2390
              // While loop
              $region56: #{_conv_bn_relu.1} parent=47 // loop_pre_header
                _
              $region57: #{_conv_bn_relu.1} parent=47 // loop_header
                %s2393 = sphi 0, %s2395
                %p2394 = scmp.ge.s32.totalorder %s2393, %s2386
                %s2398 = sphi 0, %s2405
                %s2399 = sphi %s2389, %s2408
                %s2400 = sphi %s2391, %s2409
              $region58: #{_conv_bn_relu.1} parent=47 // loop_header_branch
                %2397 = sbr.rel (%p2394) target = $region62
              $region59: #{_conv_bn_relu.1} parent=47 // loop_body
                %v2401 = vld [vmem:[%s2399] sm:$0xf]
                %2402 = vst [vmem:[%s2400] sm:$0xf] %v2401
                %s2403 = sadd.s32 1, %s2398
                %p2404 = scmp.ge.s32.totalorder %s2403, %s2386
                %s2405 = scalar_select %p2404, 0, %s2403
                %s2406 = smul.u32 %s2405, 4
                %s2407 = smul.u32 %s2405, 4
                %s2408 = scalar_lea.vmem %s2389, %s2406 [#allocation2]
                %s2409 = scalar_lea.vmem %s2391, %s2407
              $region60: #{_conv_bn_relu.1} parent=47 // loop_footer
                %s2395 = sadd.s32 %s2393, 1
              $region61: #{_conv_bn_relu.1} parent=47 // loop_footer_branch
                %2392 = sbr.rel target = $region57
              $region62: #{_conv_bn_relu.1} parent=47 // loop_exit
                _
            $region48: #{_conv_bn_relu.1} parent=39 // pred_fallthru
              _
          $region40: #{_conv_bn_relu.1} parent=35 // pred_fallthru
            _
          %2583 = vnop
        $region36: #{_conv_bn_relu.1} parent=31 // pred_fallthru
          _
      $region32: #{_conv_bn_relu.1} parent=5 // pred_fallthru
        _
      %p2584 = scmp.le.s32.totalorder 2, %s9
      // Predicated region
      $region81: #{_conv_bn_relu.1} parent=5 // pred_check
        %p2585 = pneg %p2584
      $region82: #{_conv_bn_relu.1} parent=5 // pred_check_branch
        %2587 = sbr.rel (%p2585) target = $region84
      $region83: #{_conv_bn_relu.1} parent=5 // pred_region
        %s2588 = ssub.s32 %s9, 2
        // Predicated region
        $region85: #{_conv_bn_relu.1} parent=83 // pred_check
          %p2589 = pneg %p130
        $region86: #{_conv_bn_relu.1} parent=83 // pred_check_branch
          %2591 = sbr.rel (%p2589) target = $region88
        $region87: #{_conv_bn_relu.1} parent=83 // pred_region
          %s2592 = sand.u32 %s115, 1
          %s2593 = sand.u32 %s115, 1
          %s2594 = smul.addr %s2593, 512
          %s2595 = scalar_lea.vmem [#allocation2], %s2594
        $region88: #{_conv_bn_relu.1} parent=83 // pred_fallthru
          _
      $region84: #{_conv_bn_relu.1} parent=5 // pred_fallthru
        _
    $region6: #{_conv_bn_relu.1} parent=1 // loop_footer
      %s13 = sadd.s32 1, %s9
    $region7: #{_conv_bn_relu.1} parent=1 // loop_footer_branch
      %8 = sbr.rel target = $region3
    $region8: #{_conv_bn_relu.1} parent=1 // loop_exit
      _

</llo_original>
